<compile_context>
chip_gen: v7x
topology: tpu7x:2x2x1
jax: 0.10.0
libtpu: 0.0.40
codegen_flags: <defaults>
</compile_context>

<pallas_src>
import math
import jax
import jax.numpy as jnp
from jax.experimental import pallas as pl
from jax.experimental.pallas import tpu as pltpu

# ---- small, module-consistent config -------------------------------------
B       = 2          # batch
S       = 8          # sequence length
H       = 32         # config.hidden_size
I       = 64         # config.intermediate_size
NH      = 4          # config.num_attention_heads
HD      = H // NH    # attention head size
LAYERS  = 2          # config.num_decoder_layers
LN_EPS  = 1e-12
BS      = B * S      # flattened (batch, seq) rows


# ---------------------------------------------------------------------------
# Fused Pallas kernel: one grid step == one full encoder layer for the whole
# batch.  The running hidden state is carried in a VMEM scratch across the
# (arbitrary) layer grid axis.
# ---------------------------------------------------------------------------
def encoder_stack_kernel(x_ref, mask_ref,
                         wqkv_ref, bqkv_ref, wo_ref, wi_ref, bi_ref, w2_ref,
                         vec_ref,
                         hid_ref, sc_ref,
                         h_scratch):
    layer = pl.program_id(0)

    @pl.when(layer == 0)
    def _():
        h_scratch[...] = x_ref[...].astype(jnp.float32)

    x = h_scratch[...]                         # (BS, H) f32, running hidden
    m3 = mask_ref[...].astype(jnp.float32)     # (B, S, S) additive mask

    # packed (1,H) vectors: rows = [bo, b2, g1, be1, g2, be2]
    vec = vec_ref[0]                           # (6, H)
    bo, b2  = vec[0:1, :], vec[1:2, :]
    g1, be1 = vec[2:3, :], vec[3:4, :]
    g2, be2 = vec[4:5, :], vec[5:6, :]

    def layer_norm(z, g, b):
        mu = jnp.mean(z, axis=-1, keepdims=True)
        var = jnp.mean(jnp.square(z - mu), axis=-1, keepdims=True)
        return (z - mu) * jax.lax.rsqrt(var + LN_EPS) * g + b

    # ---- fused QKV projection: one MXU push ----
    qkv = jnp.dot(x, wqkv_ref[0], preferred_element_type=jnp.float32) \
        + bqkv_ref[0]                          # (BS, 3H)

    scale = 1.0 / math.sqrt(HD)

    ctx_parts = []                             # per-head (BS, HD) contexts
    score_parts = []                           # per-head (BS, S) scores
    for h in range(NH):                        # static unroll over heads
        base = h * HD
        # sublane-only reshapes: (BS, HD) -> (B, S, HD)
        qh = qkv[:, base:base + HD].reshape(B, S, HD)
        kh = qkv[:, H + base:H + base + HD].reshape(B, S, HD)
        vh = qkv[:, 2 * H + base:2 * H + base + HD].reshape(B, S, HD)

        # batched over B: one matmul per head for the whole batch
        s = jnp.einsum('bqd,bkd->bqk', qh, kh,
                       preferred_element_type=jnp.float32) * scale + m3
        score_parts.append(s.reshape(BS, S))   # pre-softmax scores (returned)

        s_max = jnp.max(s, axis=-1, keepdims=True)
        e = jnp.exp(s - s_max)
        inv = pl.reciprocal(jnp.sum(e, axis=-1, keepdims=True), approx=True)
        p = e * inv
        ctx = jnp.einsum('bqk,bkd->bqd', p, vh,
                         preferred_element_type=jnp.float32)   # (B, S, HD)
        ctx_parts.append(ctx.reshape(BS, HD))

    ctx_all = jnp.concatenate(ctx_parts, axis=-1)        # (BS, H)
    scores_all = jnp.concatenate(score_parts, axis=-1)   # (BS, NH*S)

    # ---- BertSelfOutput: output projection + residual + LayerNorm ----
    att = jnp.dot(ctx_all, wo_ref[0], preferred_element_type=jnp.float32) + bo
    h1 = layer_norm(att + x, g1, be1)

    # ---- BertIntermediate: dense + gelu (erf form) ----
    inter = jnp.dot(h1, wi_ref[0], preferred_element_type=jnp.float32) + bi_ref[0]
    inter = 0.5 * inter * (1.0 + jax.lax.erf(inter * (1.0 / math.sqrt(2.0))))

    # ---- BertOutput: dense + residual + LayerNorm ----
    o2 = jnp.dot(inter, w2_ref[0], preferred_element_type=jnp.float32) + b2
    out = layer_norm(o2 + h1, g2, be2)

    h_scratch[...] = out                       # carry to next layer
    hid_ref[0] = out.astype(hid_ref.dtype)
    sc_ref[0] = scores_all.astype(sc_ref.dtype)


# ---------------------------------------------------------------------------
# Wrapper: single pallas_call over all layers.
# ---------------------------------------------------------------------------
def encoder_pallas(hidden_states, self_attn_mask, stacked_params,
                   output_all_encoded_layers=False):
    """Mirror of Encoder.forward.

    hidden_states: (B, S, H), self_attn_mask: (B, 1, S, S).
    stacked_params: tuple of 7 arrays, each with a leading LAYERS axis.
    """
    wqkv, bqkv, wo, wi, bi, w2, vecH = stacked_params
    L = wqkv.shape[0]
    x2d = hidden_states.reshape(BS, H).astype(jnp.float32)
    mask3 = self_attn_mask.reshape(B, S, S).astype(jnp.float32)

    n_out = L if output_all_encoded_layers else 1
    if output_all_encoded_layers:
        out_map = lambda l: (l, 0, 0)
    else:
        # constant block index across the layer axis -> outputs stay resident
        # in VMEM and only the final layer is written back to HBM.
        out_map = lambda l: (0, 0, 0)

    grid_spec = pltpu.PrefetchScalarGridSpec(
        num_scalar_prefetch=0,
        grid=(L,),
        in_specs=[
            pl.BlockSpec((BS, H), lambda l: (0, 0)),              # x (layer-0 input)
            pl.BlockSpec((B, S, S), lambda l: (0, 0, 0)),         # additive mask
            pl.BlockSpec((1, H, 3 * H), lambda l: (l, 0, 0)),     # fused Wqkv
            pl.BlockSpec((1, 1, 3 * H), lambda l: (l, 0, 0)),     # fused bqkv
            pl.BlockSpec((1, H, H), lambda l: (l, 0, 0)),         # Wo
            pl.BlockSpec((1, H, I), lambda l: (l, 0, 0)),         # Wi
            pl.BlockSpec((1, 1, I), lambda l: (l, 0, 0)),         # bi
            pl.BlockSpec((1, I, H), lambda l: (l, 0, 0)),         # W2
            pl.BlockSpec((1, 6, H), lambda l: (l, 0, 0)),         # bo,b2,g1,be1,g2,be2
        ],
        out_specs=(
            pl.BlockSpec((1, BS, H), out_map),
            pl.BlockSpec((1, BS, NH * S), out_map),
        ),
        scratch_shapes=[pltpu.VMEM((BS, H), jnp.float32)],
    )

    hid, sc = pl.pallas_call(
        encoder_stack_kernel,
        grid_spec=grid_spec,
        out_shape=(
            jax.ShapeDtypeStruct((n_out, BS, H), jnp.float32),
            jax.ShapeDtypeStruct((n_out, BS, NH * S), jnp.float32),
        ),
        compiler_params=pltpu.CompilerParams(
            dimension_semantics=("arbitrary",)),
    )(x2d, mask3, wqkv, bqkv, wo, wi, bi, w2, vecH)
    # TODO(synk): on v7x a second "parallel" batch grid axis could shard the
    # two batch elements across the two TensorCores; skipped here since the
    # kernel is launch-overhead bound at these shapes.

    # restore the module's output layout outside the kernel (cheap XLA ops)
    hid_layers = hid.reshape(n_out, B, S, H)
    # lane-dense scores (B*S, NH*S): row = b*S+s_q, col = h*S+s_k
    sc_layers = sc.reshape(n_out, B, S, NH, S).transpose(0, 1, 3, 2, 4)

    all_layers = [hid_layers[i] for i in range(n_out)]
    all_scores = [sc_layers[i] for i in range(n_out)]
    return all_layers, all_scores


# ---------------------------------------------------------------------------
# Pure-JAX reference (for correctness check only).
# ---------------------------------------------------------------------------
def encoder_layer_ref(x, mask, params):
    (wq, bq, wk, bk, wv, bv, wo, bo, g1, be1, wi, bi, w2, b2, g2, be2) = params
    q = x @ wq + bq
    k = x @ wk + bk
    v = x @ wv + bv

    def split(t):
        return t.reshape(B, S, NH, HD).transpose(0, 2, 1, 3)

    qh, kh, vh = split(q), split(k), split(v)
    scores = jnp.einsum('bhsd,bhtd->bhst', qh, kh) / math.sqrt(HD) + mask
    probs = jax.nn.softmax(scores, axis=-1)
    ctx = jnp.einsum('bhst,bhtd->bhsd', probs, vh)
    ctx = ctx.transpose(0, 2, 1, 3).reshape(B, S, H)

    def ln(z, g, b):
        mu = z.mean(-1, keepdims=True)
        var = ((z - mu) ** 2).mean(-1, keepdims=True)
        return (z - mu) / jnp.sqrt(var + LN_EPS) * g + b

    h1 = ln(ctx @ wo + bo + x, g1, be1)
    inter = h1 @ wi + bi
    inter = 0.5 * inter * (1.0 + jax.lax.erf(inter / math.sqrt(2.0)))
    out = ln(inter @ w2 + b2 + h1, g2, be2)
    return out, scores


# ---------------------------------------------------------------------------
# Deterministic synthetic parameters (unstacked per-layer + stacked/packed).
# ---------------------------------------------------------------------------
def init_layer_params(key):
    ks = jax.random.split(key, 16)

    def w(k, shp, scale=0.05):
        return (scale * jax.random.normal(k, shp)).astype(jnp.float32)

    wq, bq = w(ks[0], (H, H)), w(ks[1], (1, H))
    wk, bk = w(ks[2], (H, H)), w(ks[3], (1, H))
    wv, bv = w(ks[4], (H, H)), w(ks[5], (1, H))
    wo, bo = w(ks[6], (H, H)), w(ks[7], (1, H))
    g1 = 1.0 + w(ks[8], (1, H), 0.01)
    be1 = w(ks[9], (1, H), 0.01)
    wi, bi = w(ks[10], (H, I)), w(ks[11], (1, I))
    w2, b2 = w(ks[12], (I, H)), w(ks[13], (1, H))
    g2 = 1.0 + w(ks[14], (1, H), 0.01)
    be2 = w(ks[15], (1, H), 0.01)
    return (wq, bq, wk, bk, wv, bv, wo, bo, g1, be1, wi, bi, w2, b2, g2, be2)


def pack_params(per_layer):
    """Pack 16 per-layer params into 7 stacked arrays with a LAYERS axis."""
    def stack(fn):
        return jnp.stack([fn(p) for p in per_layer], axis=0)

    wqkv = stack(lambda p: jnp.concatenate([p[0], p[2], p[4]], axis=1))   # (H,3H)
    bqkv = stack(lambda p: jnp.concatenate([p[1], p[3], p[5]], axis=1))   # (1,3H)
    wo   = stack(lambda p: p[6])                                          # (H,H)
    wi   = stack(lambda p: p[10])                                         # (H,I)
    bi   = stack(lambda p: p[11])                                         # (1,I)
    w2   = stack(lambda p: p[12])                                         # (I,H)
    # rows: bo, b2, g1, be1, g2, be2
    vecH = stack(lambda p: jnp.concatenate(
        [p[7], p[13], p[8], p[9], p[14], p[15]], axis=0))                 # (6,H)
    return (wqkv, bqkv, wo, wi, bi, w2, vecH)


if __name__ == "__main__":
    root = jax.random.PRNGKey(0)
    kx, km, kp = jax.random.split(root, 3)

    x = jax.random.normal(kx, (B, S, H), dtype=jnp.float32)
    # additive mask: 0 for visible, -10000 for masked positions
    keep = jax.random.bernoulli(km, p=0.85, shape=(B, 1, S, S))
    mask = jnp.where(keep, 0.0, -10000.0).astype(jnp.float32)

    layer_keys = jax.random.split(kp, LAYERS)
    per_layer = [init_layer_params(k) for k in layer_keys]
    stacked = pack_params(per_layer)

    enc_layers, att_scores = encoder_pallas(x, mask, stacked)
    out = jax.block_until_ready(enc_layers[-1])
    scr = jax.block_until_ready(att_scores[-1])

    # reference check (pure JAX, exact softmax division)
    h_ref = x
    for params in per_layer:
        h_ref, scores_ref = encoder_layer_ref(h_ref, mask, params)

    # slightly relaxed tolerance: softmax denominator uses the EUP
    # approximate reciprocal (pl.reciprocal(approx=True))
    assert jnp.allclose(out, h_ref, rtol=2e-3, atol=2e-3), "hidden mismatch"
    assert jnp.allclose(scr, scores_ref, rtol=2e-3, atol=2e-3), "scores mismatch"

    print("KERNEL_OK")
</pallas_src>

<mosaic_0001>
module attributes {stable_mosaic.version = 11 : i64} {
  func.func @encoder_stack_kernel(%arg0: i32, %arg1: memref<16x32xf32, #tpu.memory_space<vmem>>, %arg2: memref<2x8x8xf32, #tpu.memory_space<vmem>>, %arg3: memref<1x32x96xf32, #tpu.memory_space<vmem>>, %arg4: memref<1x1x96xf32, #tpu.memory_space<vmem>>, %arg5: memref<1x32x32xf32, #tpu.memory_space<vmem>>, %arg6: memref<1x32x64xf32, #tpu.memory_space<vmem>>, %arg7: memref<1x1x64xf32, #tpu.memory_space<vmem>>, %arg8: memref<1x64x32xf32, #tpu.memory_space<vmem>>, %arg9: memref<1x6x32xf32, #tpu.memory_space<vmem>>, %arg10: memref<1x16x32xf32, #tpu.memory_space<vmem>>, %arg11: memref<1x16x32xf32, #tpu.memory_space<vmem>>, %arg12: memref<16x32xf32, #tpu.memory_space<vmem>>) attributes {dimension_semantics = [#tpu.dimension_semantics<arbitrary>], iteration_bounds = array<i64: 2>, scalar_prefetch = 0 : i64, scratch_operands = 1 : i64, tpu.core_type = #tpu.core_type<tc>, window_params = [{pipeline_mode = #tpu.pipeline_mode<synchronous>, transform_indices = @transform_0, window_bounds = array<i64: 16, 32>}, {pipeline_mode = #tpu.pipeline_mode<synchronous>, transform_indices = @transform_1, window_bounds = array<i64: 2, 8, 8>}, {transform_indices = @transform_2, window_bounds = array<i64: 1, 32, 96>}, {transform_indices = @transform_3, window_bounds = array<i64: 1, 1, 96>}, {transform_indices = @transform_4, window_bounds = array<i64: 1, 32, 32>}, {transform_indices = @transform_5, window_bounds = array<i64: 1, 32, 64>}, {transform_indices = @transform_6, window_bounds = array<i64: 1, 1, 64>}, {transform_indices = @transform_7, window_bounds = array<i64: 1, 64, 32>}, {transform_indices = @transform_8, window_bounds = array<i64: 1, 6, 32>}, {pipeline_mode = #tpu.pipeline_mode<synchronous>, transform_indices = @transform_9, window_bounds = array<i64: 1, 16, 32>}, {pipeline_mode = #tpu.pipeline_mode<synchronous>, transform_indices = @transform_10, window_bounds = array<i64: 1, 16, 32>}]} {
    %c0_i32 = arith.constant 0 : i32
    %0 = arith.cmpi eq, %arg0, %c0_i32 : i32
    %1 = arith.extui %0 : i1 to i32
    %c0_i32_0 = arith.constant 0 : i32
    %2 = arith.cmpi ne, %1, %c0_i32_0 : i32
    scf.if %2 {
      %c0_70 = arith.constant 0 : index
      %c0_71 = arith.constant 0 : index
      %192 = vector.load %arg1[%c0_70, %c0_71] : memref<16x32xf32, #tpu.memory_space<vmem>>, vector<16x32xf32>
      %c0_72 = arith.constant 0 : index
      %c0_73 = arith.constant 0 : index
      %193 = vector.load %arg12[%c0_72, %c0_73] : memref<16x32xf32, #tpu.memory_space<vmem>>, vector<16x32xf32>
      tpu.vector_store %arg12[%c0_72, %c0_73], %192 {strides = array<i32>} : memref<16x32xf32, #tpu.memory_space<vmem>>, vector<16x32xf32>,
    } else {
    }
    %c0 = arith.constant 0 : index
    %c0_1 = arith.constant 0 : index
    %3 = vector.load %arg12[%c0, %c0_1] : memref<16x32xf32, #tpu.memory_space<vmem>>, vector<16x32xf32>
    %c0_2 = arith.constant 0 : index
    %c0_3 = arith.constant 0 : index
    %c0_4 = arith.constant 0 : index
    %4 = vector.load %arg2[%c0_2, %c0_3, %c0_4] : memref<2x8x8xf32, #tpu.memory_space<vmem>>, vector<2x8x8xf32>
    %c0_5 = arith.constant 0 : index
    %c0_6 = arith.constant 0 : index
    %c0_7 = arith.constant 0 : index
    %5 = vector.load %arg9[%c0_5, %c0_6, %c0_7] : memref<1x6x32xf32, #tpu.memory_space<vmem>>, vector<1x6x32xf32>
    %6 = vector.shape_cast %5 : vector<1x6x32xf32> to vector<6x32xf32>
    %7 = vector.extract_strided_slice %6 {offsets = [0, 0], sizes = [1, 32], strides = [1, 1]} : vector<6x32xf32> to vector<1x32xf32>
    %8 = vector.extract_strided_slice %6 {offsets = [1, 0], sizes = [1, 32], strides = [1, 1]} : vector<6x32xf32> to vector<1x32xf32>
    %9 = vector.extract_strided_slice %6 {offsets = [2, 0], sizes = [1, 32], strides = [1, 1]} : vector<6x32xf32> to vector<1x32xf32>
    %10 = vector.extract_strided_slice %6 {offsets = [3, 0], sizes = [1, 32], strides = [1, 1]} : vector<6x32xf32> to vector<1x32xf32>
    %11 = vector.extract_strided_slice %6 {offsets = [4, 0], sizes = [1, 32], strides = [1, 1]} : vector<6x32xf32> to vector<1x32xf32>
    %12 = vector.extract_strided_slice %6 {offsets = [5, 0], sizes = [1, 32], strides = [1, 1]} : vector<6x32xf32> to vector<1x32xf32>
    %c0_8 = arith.constant 0 : index
    %c0_9 = arith.constant 0 : index
    %c0_10 = arith.constant 0 : index
    %13 = vector.load %arg3[%c0_8, %c0_9, %c0_10] : memref<1x32x96xf32, #tpu.memory_space<vmem>>, vector<1x32x96xf32>
    %14 = vector.shape_cast %13 : vector<1x32x96xf32> to vector<32x96xf32>
    %cst = arith.constant dense<0.000000e+00> : vector<16x96xf32>
    %15 = tpu.matmul %3, %14, %cst {dimension_numbers = #tpu.dot_dimension_numbers<[1], [0], [0], [1], [0, 0, 1, 1], [], []>} : vector<16x32xf32>, vector<32x96xf32>, vector<16x96xf32> -> vector<16x96xf32>
    %c0_11 = arith.constant 0 : index
    %c0_12 = arith.constant 0 : index
    %c0_13 = arith.constant 0 : index
    %16 = vector.load %arg4[%c0_11, %c0_12, %c0_13] : memref<1x1x96xf32, #tpu.memory_space<vmem>>, vector<1x1x96xf32>
    %17 = vector.shape_cast %16 : vector<1x1x96xf32> to vector<1x96xf32>
    %18 = vector.broadcast %17 : vector<1x96xf32> to vector<16x96xf32>
    %19 = arith.addf %15, %18 : vector<16x96xf32>
    %20 = vector.extract_strided_slice %19 {offsets = [0, 0], sizes = [16, 8], strides = [1, 1]} : vector<16x96xf32> to vector<16x8xf32>
    %21 = vector.shape_cast %20 : vector<16x8xf32> to vector<2x8x8xf32>
    %22 = vector.extract_strided_slice %19 {offsets = [0, 32], sizes = [16, 8], strides = [1, 1]} : vector<16x96xf32> to vector<16x8xf32>
    %23 = vector.shape_cast %22 : vector<16x8xf32> to vector<2x8x8xf32>
    %24 = vector.extract_strided_slice %19 {offsets = [0, 64], sizes = [16, 8], strides = [1, 1]} : vector<16x96xf32> to vector<16x8xf32>
    %25 = vector.shape_cast %24 : vector<16x8xf32> to vector<2x8x8xf32>
    "tpu.trace_start"() <{level = 10 : i32, message = "bqd,bkd->bqk"}> : () -> ()
    %cst_14 = arith.constant dense<0.000000e+00> : vector<2x8x8xf32>
    %26 = tpu.matmul %21, %23, %cst_14 {dimension_numbers = #tpu.dot_dimension_numbers<[2], [2], [1], [1], [0, 0, 0, 1, 1, 1], [0], [0]>} : vector<2x8x8xf32>, vector<2x8x8xf32>, vector<2x8x8xf32> -> vector<2x8x8xf32>
    "tpu.trace_stop"() : () -> ()
    %cst_15 = arith.constant 0.353553385 : f32
    %27 = vector.broadcast %cst_15 : f32 to vector<2x8x8xf32>
    %28 = arith.mulf %26, %27 : vector<2x8x8xf32>
    %29 = arith.addf %28, %4 : vector<2x8x8xf32>
    %30 = vector.shape_cast %29 : vector<2x8x8xf32> to vector<16x8xf32>
    %cst_16 = arith.constant dense<0xFF800000> : vector<2x8xf32>
    %31 = vector.multi_reduction <maximumf>, %29, %cst_16 [2] : vector<2x8x8xf32> to vector<2x8xf32>
    %32 = vector.shape_cast %31 : vector<2x8xf32> to vector<2x8x1xf32>
    %33 = vector.broadcast %32 : vector<2x8x1xf32> to vector<2x8x8xf32>
    %34 = arith.subf %29, %33 : vector<2x8x8xf32>
    %35 = math.exp %34 : vector<2x8x8xf32>
    %cst_17 = arith.constant dense<0.000000e+00> : vector<2x8xf32>
    %36 = vector.multi_reduction <add>, %35, %cst_17 [2] : vector<2x8x8xf32> to vector<2x8xf32>
    %37 = vector.shape_cast %36 : vector<2x8xf32> to vector<2x8x1xf32>
    %38 = tpu.reciprocal %37 {approx = true} : vector<2x8x1xf32> -> vector<2x8x1xf32>
    %39 = vector.broadcast %38 : vector<2x8x1xf32> to vector<2x8x8xf32>
    %40 = arith.mulf %35, %39 : vector<2x8x8xf32>
    "tpu.trace_start"() <{level = 10 : i32, message = "bqk,bkd->bqd"}> : () -> ()
    %cst_18 = arith.constant dense<0.000000e+00> : vector<2x8x8xf32>
    %41 = tpu.matmul %40, %25, %cst_18 {dimension_numbers = #tpu.dot_dimension_numbers<[2], [1], [1], [2], [0, 0, 0, 1, 1, 2], [0], [0]>} : vector<2x8x8xf32>, vector<2x8x8xf32>, vector<2x8x8xf32> -> vector<2x8x8xf32>
    "tpu.trace_stop"() : () -> ()
    %42 = vector.shape_cast %41 : vector<2x8x8xf32> to vector<16x8xf32>
    %43 = vector.extract_strided_slice %19 {offsets = [0, 8], sizes = [16, 8], strides = [1, 1]} : vector<16x96xf32> to vector<16x8xf32>
    %44 = vector.shape_cast %43 : vector<16x8xf32> to vector<2x8x8xf32>
    %45 = vector.extract_strided_slice %19 {offsets = [0, 40], sizes = [16, 8], strides = [1, 1]} : vector<16x96xf32> to vector<16x8xf32>
    %46 = vector.shape_cast %45 : vector<16x8xf32> to vector<2x8x8xf32>
    %47 = vector.extract_strided_slice %19 {offsets = [0, 72], sizes = [16, 8], strides = [1, 1]} : vector<16x96xf32> to vector<16x8xf32>
    %48 = vector.shape_cast %47 : vector<16x8xf32> to vector<2x8x8xf32>
    "tpu.trace_start"() <{level = 10 : i32, message = "bqd,bkd->bqk"}> : () -> ()
    %cst_19 = arith.constant dense<0.000000e+00> : vector<2x8x8xf32>
    %49 = tpu.matmul %44, %46, %cst_19 {dimension_numbers = #tpu.dot_dimension_numbers<[2], [2], [1], [1], [0, 0, 0, 1, 1, 1], [0], [0]>} : vector<2x8x8xf32>, vector<2x8x8xf32>, vector<2x8x8xf32> -> vector<2x8x8xf32>
    "tpu.trace_stop"() : () -> ()
    %cst_20 = arith.constant 0.353553385 : f32
    %50 = vector.broadcast %cst_20 : f32 to vector<2x8x8xf32>
    %51 = arith.mulf %49, %50 : vector<2x8x8xf32>
    %52 = arith.addf %51, %4 : vector<2x8x8xf32>
    %53 = vector.shape_cast %52 : vector<2x8x8xf32> to vector<16x8xf32>
    %cst_21 = arith.constant dense<0xFF800000> : vector<2x8xf32>
    %54 = vector.multi_reduction <maximumf>, %52, %cst_21 [2] : vector<2x8x8xf32> to vector<2x8xf32>
    %55 = vector.shape_cast %54 : vector<2x8xf32> to vector<2x8x1xf32>
    %56 = vector.broadcast %55 : vector<2x8x1xf32> to vector<2x8x8xf32>
    %57 = arith.subf %52, %56 : vector<2x8x8xf32>
    %58 = math.exp %57 : vector<2x8x8xf32>
    %cst_22 = arith.constant dense<0.000000e+00> : vector<2x8xf32>
    %59 = vector.multi_reduction <add>, %58, %cst_22 [2] : vector<2x8x8xf32> to vector<2x8xf32>
    %60 = vector.shape_cast %59 : vector<2x8xf32> to vector<2x8x1xf32>
    %61 = tpu.reciprocal %60 {approx = true} : vector<2x8x1xf32> -> vector<2x8x1xf32>
    %62 = vector.broadcast %61 : vector<2x8x1xf32> to vector<2x8x8xf32>
    %63 = arith.mulf %58, %62 : vector<2x8x8xf32>
    "tpu.trace_start"() <{level = 10 : i32, message = "bqk,bkd->bqd"}> : () -> ()
    %cst_23 = arith.constant dense<0.000000e+00> : vector<2x8x8xf32>
    %64 = tpu.matmul %63, %48, %cst_23 {dimension_numbers = #tpu.dot_dimension_numbers<[2], [1], [1], [2], [0, 0, 0, 1, 1, 2], [0], [0]>} : vector<2x8x8xf32>, vector<2x8x8xf32>, vector<2x8x8xf32> -> vector<2x8x8xf32>
    "tpu.trace_stop"() : () -> ()
    %65 = vector.shape_cast %64 : vector<2x8x8xf32> to vector<16x8xf32>
    %66 = vector.extract_strided_slice %19 {offsets = [0, 16], sizes = [16, 8], strides = [1, 1]} : vector<16x96xf32> to vector<16x8xf32>
    %67 = vector.shape_cast %66 : vector<16x8xf32> to vector<2x8x8xf32>
    %68 = vector.extract_strided_slice %19 {offsets = [0, 48], sizes = [16, 8], strides = [1, 1]} : vector<16x96xf32> to vector<16x8xf32>
    %69 = vector.shape_cast %68 : vector<16x8xf32> to vector<2x8x8xf32>
    %70 = vector.extract_strided_slice %19 {offsets = [0, 80], sizes = [16, 8], strides = [1, 1]} : vector<16x96xf32> to vector<16x8xf32>
    %71 = vector.shape_cast %70 : vector<16x8xf32> to vector<2x8x8xf32>
    "tpu.trace_start"() <{level = 10 : i32, message = "bqd,bkd->bqk"}> : () -> ()
    %cst_24 = arith.constant dense<0.000000e+00> : vector<2x8x8xf32>
    %72 = tpu.matmul %67, %69, %cst_24 {dimension_numbers = #tpu.dot_dimension_numbers<[2], [2], [1], [1], [0, 0, 0, 1, 1, 1], [0], [0]>} : vector<2x8x8xf32>, vector<2x8x8xf32>, vector<2x8x8xf32> -> vector<2x8x8xf32>
    "tpu.trace_stop"() : () -> ()
    %cst_25 = arith.constant 0.353553385 : f32
    %73 = vector.broadcast %cst_25 : f32 to vector<2x8x8xf32>
    %74 = arith.mulf %72, %73 : vector<2x8x8xf32>
    %75 = arith.addf %74, %4 : vector<2x8x8xf32>
    %76 = vector.shape_cast %75 : vector<2x8x8xf32> to vector<16x8xf32>
    %cst_26 = arith.constant dense<0xFF800000> : vector<2x8xf32>
    %77 = vector.multi_reduction <maximumf>, %75, %cst_26 [2] : vector<2x8x8xf32> to vector<2x8xf32>
    %78 = vector.shape_cast %77 : vector<2x8xf32> to vector<2x8x1xf32>
    %79 = vector.broadcast %78 : vector<2x8x1xf32> to vector<2x8x8xf32>
    %80 = arith.subf %75, %79 : vector<2x8x8xf32>
    %81 = math.exp %80 : vector<2x8x8xf32>
    %cst_27 = arith.constant dense<0.000000e+00> : vector<2x8xf32>
    %82 = vector.multi_reduction <add>, %81, %cst_27 [2] : vector<2x8x8xf32> to vector<2x8xf32>
    %83 = vector.shape_cast %82 : vector<2x8xf32> to vector<2x8x1xf32>
    %84 = tpu.reciprocal %83 {approx = true} : vector<2x8x1xf32> -> vector<2x8x1xf32>
    %85 = vector.broadcast %84 : vector<2x8x1xf32> to vector<2x8x8xf32>
    %86 = arith.mulf %81, %85 : vector<2x8x8xf32>
    "tpu.trace_start"() <{level = 10 : i32, message = "bqk,bkd->bqd"}> : () -> ()
    %cst_28 = arith.constant dense<0.000000e+00> : vector<2x8x8xf32>
    %87 = tpu.matmul %86, %71, %cst_28 {dimension_numbers = #tpu.dot_dimension_numbers<[2], [1], [1], [2], [0, 0, 0, 1, 1, 2], [0], [0]>} : vector<2x8x8xf32>, vector<2x8x8xf32>, vector<2x8x8xf32> -> vector<2x8x8xf32>
    "tpu.trace_stop"() : () -> ()
    %88 = vector.shape_cast %87 : vector<2x8x8xf32> to vector<16x8xf32>
    %89 = vector.extract_strided_slice %19 {offsets = [0, 24], sizes = [16, 8], strides = [1, 1]} : vector<16x96xf32> to vector<16x8xf32>
    %90 = vector.shape_cast %89 : vector<16x8xf32> to vector<2x8x8xf32>
    %91 = vector.extract_strided_slice %19 {offsets = [0, 56], sizes = [16, 8], strides = [1, 1]} : vector<16x96xf32> to vector<16x8xf32>
    %92 = vector.shape_cast %91 : vector<16x8xf32> to vector<2x8x8xf32>
    %93 = vector.extract_strided_slice %19 {offsets = [0, 88], sizes = [16, 8], strides = [1, 1]} : vector<16x96xf32> to vector<16x8xf32>
    %94 = vector.shape_cast %93 : vector<16x8xf32> to vector<2x8x8xf32>
    "tpu.trace_start"() <{level = 10 : i32, message = "bqd,bkd->bqk"}> : () -> ()
    %cst_29 = arith.constant dense<0.000000e+00> : vector<2x8x8xf32>
    %95 = tpu.matmul %90, %92, %cst_29 {dimension_numbers = #tpu.dot_dimension_numbers<[2], [2], [1], [1], [0, 0, 0, 1, 1, 1], [0], [0]>} : vector<2x8x8xf32>, vector<2x8x8xf32>, vector<2x8x8xf32> -> vector<2x8x8xf32>
    "tpu.trace_stop"() : () -> ()
    %cst_30 = arith.constant 0.353553385 : f32
    %96 = vector.broadcast %cst_30 : f32 to vector<2x8x8xf32>
    %97 = arith.mulf %95, %96 : vector<2x8x8xf32>
    %98 = arith.addf %97, %4 : vector<2x8x8xf32>
    %99 = vector.shape_cast %98 : vector<2x8x8xf32> to vector<16x8xf32>
    %cst_31 = arith.constant dense<0xFF800000> : vector<2x8xf32>
    %100 = vector.multi_reduction <maximumf>, %98, %cst_31 [2] : vector<2x8x8xf32> to vector<2x8xf32>
    %101 = vector.shape_cast %100 : vector<2x8xf32> to vector<2x8x1xf32>
    %102 = vector.broadcast %101 : vector<2x8x1xf32> to vector<2x8x8xf32>
    %103 = arith.subf %98, %102 : vector<2x8x8xf32>
    %104 = math.exp %103 : vector<2x8x8xf32>
    %cst_32 = arith.constant dense<0.000000e+00> : vector<2x8xf32>
    %105 = vector.multi_reduction <add>, %104, %cst_32 [2] : vector<2x8x8xf32> to vector<2x8xf32>
    %106 = vector.shape_cast %105 : vector<2x8xf32> to vector<2x8x1xf32>
    %107 = tpu.reciprocal %106 {approx = true} : vector<2x8x1xf32> -> vector<2x8x1xf32>
    %108 = vector.broadcast %107 : vector<2x8x1xf32> to vector<2x8x8xf32>
    %109 = arith.mulf %104, %108 : vector<2x8x8xf32>
    "tpu.trace_start"() <{level = 10 : i32, message = "bqk,bkd->bqd"}> : () -> ()
    %cst_33 = arith.constant dense<0.000000e+00> : vector<2x8x8xf32>
    %110 = tpu.matmul %109, %94, %cst_33 {dimension_numbers = #tpu.dot_dimension_numbers<[2], [1], [1], [2], [0, 0, 0, 1, 1, 2], [0], [0]>} : vector<2x8x8xf32>, vector<2x8x8xf32>, vector<2x8x8xf32> -> vector<2x8x8xf32>
    "tpu.trace_stop"() : () -> ()
    %111 = vector.shape_cast %110 : vector<2x8x8xf32> to vector<16x8xf32>
    %112 = tpu.concatenate %42, %65, %88, %111 in 1 : vector<16x8xf32>, vector<16x8xf32>, vector<16x8xf32>, vector<16x8xf32> -> vector<16x32xf32>
    %113 = tpu.concatenate %30, %53, %76, %99 in 1 : vector<16x8xf32>, vector<16x8xf32>, vector<16x8xf32>, vector<16x8xf32> -> vector<16x32xf32>
    %c0_34 = arith.constant 0 : index
    %c0_35 = arith.constant 0 : index
    %c0_36 = arith.constant 0 : index
    %114 = vector.load %arg5[%c0_34, %c0_35, %c0_36] : memref<1x32x32xf32, #tpu.memory_space<vmem>>, vector<1x32x32xf32>
    %115 = vector.shape_cast %114 : vector<1x32x32xf32> to vector<32x32xf32>
    %cst_37 = arith.constant dense<0.000000e+00> : vector<16x32xf32>
    %116 = tpu.matmul %112, %115, %cst_37 {dimension_numbers = #tpu.dot_dimension_numbers<[1], [0], [0], [1], [0, 0, 1, 1], [], []>} : vector<16x32xf32>, vector<32x32xf32>, vector<16x32xf32> -> vector<16x32xf32>
    %117 = vector.broadcast %7 : vector<1x32xf32> to vector<16x32xf32>
    %118 = arith.addf %116, %117 : vector<16x32xf32>
    %119 = arith.addf %118, %3 : vector<16x32xf32>
    %cst_38 = arith.constant dense<0.000000e+00> : vector<16xf32>
    %120 = vector.multi_reduction <add>, %119, %cst_38 [1] : vector<16x32xf32> to vector<16xf32>
    %121 = vector.shape_cast %120 : vector<16xf32> to vector<16x1xf32>
    %cst_39 = arith.constant 3.200000e+01 : f32
    %122 = vector.broadcast %cst_39 : f32 to vector<16x1xf32>
    %123 = arith.divf %121, %122 : vector<16x1xf32>
    %124 = vector.broadcast %123 : vector<16x1xf32> to vector<16x32xf32>
    %125 = arith.subf %119, %124 : vector<16x32xf32>
    %126 = arith.mulf %125, %125 : vector<16x32xf32>
    %cst_40 = arith.constant dense<0.000000e+00> : vector<16xf32>
    %127 = vector.multi_reduction <add>, %126, %cst_40 [1] : vector<16x32xf32> to vector<16xf32>
    %128 = vector.shape_cast %127 : vector<16xf32> to vector<16x1xf32>
    %cst_41 = arith.constant 3.200000e+01 : f32
    %129 = vector.broadcast %cst_41 : f32 to vector<16x1xf32>
    %130 = arith.divf %128, %129 : vector<16x1xf32>
    %131 = vector.broadcast %123 : vector<16x1xf32> to vector<16x32xf32>
    %132 = arith.subf %119, %131 : vector<16x32xf32>
    %cst_42 = arith.constant 9.99999996E-13 : f32
    %133 = vector.broadcast %cst_42 : f32 to vector<16x1xf32>
    %134 = arith.addf %130, %133 : vector<16x1xf32>
    %135 = math.rsqrt %134 : vector<16x1xf32>
    %136 = vector.broadcast %135 : vector<16x1xf32> to vector<16x32xf32>
    %137 = arith.mulf %132, %136 : vector<16x32xf32>
    %138 = vector.broadcast %9 : vector<1x32xf32> to vector<16x32xf32>
    %139 = arith.mulf %137, %138 : vector<16x32xf32>
    %140 = vector.broadcast %10 : vector<1x32xf32> to vector<16x32xf32>
    %141 = arith.addf %139, %140 : vector<16x32xf32>
    %c0_43 = arith.constant 0 : index
    %c0_44 = arith.constant 0 : index
    %c0_45 = arith.constant 0 : index
    %142 = vector.load %arg6[%c0_43, %c0_44, %c0_45] : memref<1x32x64xf32, #tpu.memory_space<vmem>>, vector<1x32x64xf32>
    %143 = vector.shape_cast %142 : vector<1x32x64xf32> to vector<32x64xf32>
    %cst_46 = arith.constant dense<0.000000e+00> : vector<16x64xf32>
    %144 = tpu.matmul %141, %143, %cst_46 {dimension_numbers = #tpu.dot_dimension_numbers<[1], [0], [0], [1], [0, 0, 1, 1], [], []>} : vector<16x32xf32>, vector<32x64xf32>, vector<16x64xf32> -> vector<16x64xf32>
    %c0_47 = arith.constant 0 : index
    %c0_48 = arith.constant 0 : index
    %c0_49 = arith.constant 0 : index
    %145 = vector.load %arg7[%c0_47, %c0_48, %c0_49] : memref<1x1x64xf32, #tpu.memory_space<vmem>>, vector<1x1x64xf32>
    %146 = vector.shape_cast %145 : vector<1x1x64xf32> to vector<1x64xf32>
    %147 = vector.broadcast %146 : vector<1x64xf32> to vector<16x64xf32>
    %148 = arith.addf %144, %147 : vector<16x64xf32>
    %cst_50 = arith.constant 5.000000e-01 : f32
    %149 = vector.broadcast %cst_50 : f32 to vector<16x64xf32>
    %150 = arith.mulf %149, %148 : vector<16x64xf32>
    %cst_51 = arith.constant 0.707106769 : f32
    %151 = vector.broadcast %cst_51 : f32 to vector<16x64xf32>
    %152 = arith.mulf %148, %151 : vector<16x64xf32>
    %153 = math.erf %152 : vector<16x64xf32>
    %cst_52 = arith.constant 1.000000e+00 : f32
    %154 = vector.broadcast %cst_52 : f32 to vector<16x64xf32>
    %155 = arith.addf %154, %153 : vector<16x64xf32>
    %156 = arith.mulf %150, %155 : vector<16x64xf32>
    %c0_53 = arith.constant 0 : index
    %c0_54 = arith.constant 0 : index
    %c0_55 = arith.constant 0 : index
    %157 = vector.load %arg8[%c0_53, %c0_54, %c0_55] : memref<1x64x32xf32, #tpu.memory_space<vmem>>, vector<1x64x32xf32>
    %158 = vector.shape_cast %157 : vector<1x64x32xf32> to vector<64x32xf32>
    %cst_56 = arith.constant dense<0.000000e+00> : vector<16x32xf32>
    %159 = tpu.matmul %156, %158, %cst_56 {dimension_numbers = #tpu.dot_dimension_numbers<[1], [0], [0], [1], [0, 0, 1, 1], [], []>} : vector<16x64xf32>, vector<64x32xf32>, vector<16x32xf32> -> vector<16x32xf32>
    %160 = vector.broadcast %8 : vector<1x32xf32> to vector<16x32xf32>
    %161 = arith.addf %159, %160 : vector<16x32xf32>
    %162 = arith.addf %161, %141 : vector<16x32xf32>
    %cst_57 = arith.constant dense<0.000000e+00> : vector<16xf32>
    %163 = vector.multi_reduction <add>, %162, %cst_57 [1] : vector<16x32xf32> to vector<16xf32>
    %164 = vector.shape_cast %163 : vector<16xf32> to vector<16x1xf32>
    %cst_58 = arith.constant 3.200000e+01 : f32
    %165 = vector.broadcast %cst_58 : f32 to vector<16x1xf32>
    %166 = arith.divf %164, %165 : vector<16x1xf32>
    %167 = vector.broadcast %166 : vector<16x1xf32> to vector<16x32xf32>
    %168 = arith.subf %162, %167 : vector<16x32xf32>
    %169 = arith.mulf %168, %168 : vector<16x32xf32>
    %cst_59 = arith.constant dense<0.000000e+00> : vector<16xf32>
    %170 = vector.multi_reduction <add>, %169, %cst_59 [1] : vector<16x32xf32> to vector<16xf32>
    %171 = vector.shape_cast %170 : vector<16xf32> to vector<16x1xf32>
    %cst_60 = arith.constant 3.200000e+01 : f32
    %172 = vector.broadcast %cst_60 : f32 to vector<16x1xf32>
    %173 = arith.divf %171, %172 : vector<16x1xf32>
    %174 = vector.broadcast %166 : vector<16x1xf32> to vector<16x32xf32>
    %175 = arith.subf %162, %174 : vector<16x32xf32>
    %cst_61 = arith.constant 9.99999996E-13 : f32
    %176 = vector.broadcast %cst_61 : f32 to vector<16x1xf32>
    %177 = arith.addf %173, %176 : vector<16x1xf32>
    %178 = math.rsqrt %177 : vector<16x1xf32>
    %179 = vector.broadcast %178 : vector<16x1xf32> to vector<16x32xf32>
    %180 = arith.mulf %175, %179 : vector<16x32xf32>
    %181 = vector.broadcast %11 : vector<1x32xf32> to vector<16x32xf32>
    %182 = arith.mulf %180, %181 : vector<16x32xf32>
    %183 = vector.broadcast %12 : vector<1x32xf32> to vector<16x32xf32>
    %184 = arith.addf %182, %183 : vector<16x32xf32>
    %c0_62 = arith.constant 0 : index
    %c0_63 = arith.constant 0 : index
    %185 = vector.load %arg12[%c0_62, %c0_63] : memref<16x32xf32, #tpu.memory_space<vmem>>, vector<16x32xf32>
    tpu.vector_store %arg12[%c0_62, %c0_63], %184 {strides = array<i32>} : memref<16x32xf32, #tpu.memory_space<vmem>>, vector<16x32xf32>,
    %c0_64 = arith.constant 0 : index
    %c0_65 = arith.constant 0 : index
    %c0_66 = arith.constant 0 : index
    %186 = vector.load %arg10[%c0_64, %c0_65, %c0_66] : memref<1x16x32xf32, #tpu.memory_space<vmem>>, vector<1x16x32xf32>
    %187 = vector.shape_cast %186 : vector<1x16x32xf32> to vector<16x32xf32>
    %188 = vector.shape_cast %184 : vector<16x32xf32> to vector<1x16x32xf32>
    tpu.vector_store %arg10[%c0_64, %c0_65, %c0_66], %188 {strides = array<i32>} : memref<1x16x32xf32, #tpu.memory_space<vmem>>, vector<1x16x32xf32>,
    %c0_67 = arith.constant 0 : index
    %c0_68 = arith.constant 0 : index
    %c0_69 = arith.constant 0 : index
    %189 = vector.load %arg11[%c0_67, %c0_68, %c0_69] : memref<1x16x32xf32, #tpu.memory_space<vmem>>, vector<1x16x32xf32>
    %190 = vector.shape_cast %189 : vector<1x16x32xf32> to vector<16x32xf32>
    %191 = vector.shape_cast %113 : vector<16x32xf32> to vector<1x16x32xf32>
    tpu.vector_store %arg11[%c0_67, %c0_68, %c0_69], %191 {strides = array<i32>} : memref<1x16x32xf32, #tpu.memory_space<vmem>>, vector<1x16x32xf32>,
    return
  }
  func.func @transform_0(%arg0: i32) -> (i32, i32) {
    %c0_i32 = arith.constant 0 : i32
    %c0_i32_0 = arith.constant 0 : i32
    %c0_i32_1 = arith.constant 0 : i32
    return %c0_i32, %c0_i32_0 : i32, i32
  }
  func.func @transform_1(%arg0: i32) -> (i32, i32, i32) {
    %c0_i32 = arith.constant 0 : i32
    %c0_i32_0 = arith.constant 0 : i32
    %c0_i32_1 = arith.constant 0 : i32
    %c0_i32_2 = arith.constant 0 : i32
    return %c0_i32, %c0_i32_0, %c0_i32_1 : i32, i32, i32
  }
  func.func @transform_2(%arg0: i32) -> (i32, i32, i32) {
    %c0_i32 = arith.constant 0 : i32
    %c0_i32_0 = arith.constant 0 : i32
    %c0_i32_1 = arith.constant 0 : i32
    return %arg0, %c0_i32, %c0_i32_0 : i32, i32, i32
  }
  func.func @transform_3(%arg0: i32) -> (i32, i32, i32) {
    %c0_i32 = arith.constant 0 : i32
    %c0_i32_0 = arith.constant 0 : i32
    %c0_i32_1 = arith.constant 0 : i32
    return %arg0, %c0_i32, %c0_i32_0 : i32, i32, i32
  }
  func.func @transform_4(%arg0: i32) -> (i32, i32, i32) {
    %c0_i32 = arith.constant 0 : i32
    %c0_i32_0 = arith.constant 0 : i32
    %c0_i32_1 = arith.constant 0 : i32
    return %arg0, %c0_i32, %c0_i32_0 : i32, i32, i32
  }
  func.func @transform_5(%arg0: i32) -> (i32, i32, i32) {
    %c0_i32 = arith.constant 0 : i32
    %c0_i32_0 = arith.constant 0 : i32
    %c0_i32_1 = arith.constant 0 : i32
    return %arg0, %c0_i32, %c0_i32_0 : i32, i32, i32
  }
  func.func @transform_6(%arg0: i32) -> (i32, i32, i32) {
    %c0_i32 = arith.constant 0 : i32
    %c0_i32_0 = arith.constant 0 : i32
    %c0_i32_1 = arith.constant 0 : i32
    return %arg0, %c0_i32, %c0_i32_0 : i32, i32, i32
  }
  func.func @transform_7(%arg0: i32) -> (i32, i32, i32) {
    %c0_i32 = arith.constant 0 : i32
    %c0_i32_0 = arith.constant 0 : i32
    %c0_i32_1 = arith.constant 0 : i32
    return %arg0, %c0_i32, %c0_i32_0 : i32, i32, i32
  }
  func.func @transform_8(%arg0: i32) -> (i32, i32, i32) {
    %c0_i32 = arith.constant 0 : i32
    %c0_i32_0 = arith.constant 0 : i32
    %c0_i32_1 = arith.constant 0 : i32
    return %arg0, %c0_i32, %c0_i32_0 : i32, i32, i32
  }
  func.func @transform_9(%arg0: i32) -> (i32, i32, i32) {
    %c0_i32 = arith.constant 0 : i32
    %c0_i32_0 = arith.constant 0 : i32
    %c0_i32_1 = arith.constant 0 : i32
    %c0_i32_2 = arith.constant 0 : i32
    return %c0_i32, %c0_i32_0, %c0_i32_1 : i32, i32, i32
  }
  func.func @transform_10(%arg0: i32) -> (i32, i32, i32) {
    %c0_i32 = arith.constant 0 : i32
    %c0_i32_0 = arith.constant 0 : i32
    %c0_i32_1 = arith.constant 0 : i32
    %c0_i32_2 = arith.constant 0 : i32
    return %c0_i32, %c0_i32_0, %c0_i32_1 : i32, i32, i32
  }
}

</mosaic_0001>

<llo_original>
// kernel: tpu_custom_call.1
$region0: #{tpu_custom_call.1}
  #allocation0 [shape = 'u32[]', space=smem, size = 0x4, offset = 0x4, fixed_abs, tag = 'smem constant byte address 0x4 - core index']
  #allocation1 [shape = 'u32[144,128]{1,0:T(1,128)}', space=vmem, size = 0x12000, scoped, tag = 'internal scratch']
  #allocation2 [shape = 'f32[16,32]{1,0:T(8,128)}', space=vmem, size = 0x2000, scoped, tag = 'scratch operand']
  %s0 = inlined_call_operand.vmem [shape: f32[16,32], index: 0, kind: input, shape index: {}]
  %s1 = inlined_call_operand.hbm [shape: f32[2,8,8], index: 1, kind: input, shape index: {}]
  %s2 = inlined_call_operand.vmem [shape: f32[2,32,96], index: 2, kind: input, shape index: {}]
  %s3 = inlined_call_operand.vmem [shape: f32[2,1,96], index: 3, kind: input, shape index: {}]
  %s4 = inlined_call_operand.vmem [shape: f32[2,32,32], index: 4, kind: input, shape index: {}]
  %s5 = inlined_call_operand.vmem [shape: f32[2,32,64], index: 5, kind: input, shape index: {}]
  %s6 = inlined_call_operand.vmem [shape: f32[2,1,64], index: 6, kind: input, shape index: {}]
  %s7 = inlined_call_operand.vmem [shape: f32[2,64,32], index: 7, kind: input, shape index: {}]
  %s8 = inlined_call_operand.vmem [shape: f32[2,6,32], index: 8, kind: input, shape index: {}]
  %s9 = inlined_call_operand.hbm [shape: f32[1,16,32], index: 9, kind: output, shape index: {0}]
  %s10 = inlined_call_operand.hbm [shape: f32[1,16,32], index: 10, kind: output, shape index: {1}]
  %11 = xla_tuple %s9, %s10
  %s12 = sld [smem:[#allocation0]]
  $region85: #{tpu_custom_call.1} parent=0
    _
  %s14 = ssub.s32 1, %s12
  %s15 = scalar_select 0, %s14, %s12
  $region1: #{tpu_custom_call.1} parent=0
    #allocation3 [shape = 'u8[8192]{0}', space=vmem, size = 0x2000, scoped, tag = 'input window, operand 1, single buffered']
    #allocation4 [shape = 's32[2]{0}', space=sflag, size = 0x8, scoped, tag = 'scoped memory for tpu_custom_call.1']
    #allocation5 [shape = 's32[2]{0}', space=sflag, size = 0x8, scoped, tag = 'scoped memory for tpu_custom_call.1']
    #allocation6 [shape = 'u8[8192]{0}', space=vmem, size = 0x2000, scoped, tag = 'output window, operand 0, single buffered']
    #allocation7 [shape = 'u8[8192]{0}', space=vmem, size = 0x2000, scoped, tag = 'output window, operand 1, single buffered']
    #allocation8 [shape = 's32[1]{0}', space=sflag, size = 0x4, scoped, tag = 'scoped memory for tpu_custom_call.1']
    %16 = vsyncpa [#allocation4], 0
    %17 = vsyncpa [#allocation5], 0
    %18 = vsyncpa [#allocation8], 0
    loop: start=0, step=1, limit=4
    $region2: #{tpu_custom_call.1} parent=1 // loop_pre_header
      _
    $region3: #{tpu_custom_call.1} parent=1 // loop_header
      %s20 = sphi 0, %s24
      %p21 = scmp.ge.s32.totalorder %s20, 4
      %s28 = sphi 0, %s28
      %s30 = sphi 0, %s28
      %s31 = sphi 0, %s30
      %s45 = sphi 0, %s31
      %s49 = sphi 0, %s49
      %s51 = sphi 0, %s49
      %s52 = sphi 0, %s51
      %s66 = sphi 0, %s52
      %s72 = sphi 0, %s74
      %s75 = sphi 0, %s72
      %s76 = sphi 0, %s75
      %s92 = sphi 0, %s76
      %s98 = sphi 0, %s100
      %s101 = sphi 0, %s98
      %s102 = sphi 0, %s101
      %s118 = sphi 0, %s102
      %s124 = sphi 0, %s126
      %s127 = sphi 0, %s124
      %s128 = sphi 0, %s127
      %s144 = sphi 0, %s128
      %s150 = sphi 0, %s152
      %s153 = sphi 0, %s150
      %s154 = sphi 0, %s153
      %s170 = sphi 0, %s154
      %s176 = sphi 0, %s178
      %s179 = sphi 0, %s176
      %s180 = sphi 0, %s179
      %s196 = sphi 0, %s180
      %s202 = sphi 0, %s204
      %s205 = sphi 0, %s202
      %s206 = sphi 0, %s205
      %s222 = sphi 0, %s206
      %s228 = sphi 0, %s230
      %s231 = sphi 0, %s228
      %s232 = sphi 0, %s231
      %s248 = sphi 0, %s232
      %s252 = sphi 0, %s252
      %s254 = sphi 0, %s252
      %s255 = sphi 0, %s254
      %s269 = sphi 0, %s255
      %s273 = sphi 0, %s273
      %s275 = sphi 0, %s273
      %s276 = sphi 0, %s275
      %s290 = sphi 0, %s276
    $region4: #{tpu_custom_call.1} parent=1 // loop_header_branch
      %23 = sbr.rel (%p21) target = $region8
    $region5: #{tpu_custom_call.1} parent=1 // loop_body
      %s25 = ssub.s32 %s20, 1
      %s26 = ssub.s32 %s20, 2
      %s27 = sadd.s32 %s20, 1
      %s29 = sadd.s32 %s28, 1
      %p32 = scmp.eq.s32.totalorder %s20, 1
      %p33 = scmp.ne.s32.totalorder %s28, %s30
      %p34 = scmp.eq.s32.totalorder %s20, 0
      %p35 = por %p33, %p34
      %p36 = scmp.ne.s32.totalorder %s28, %s30
      %p37 = scmp.eq.s32.totalorder %s25, 1
      %p38 = por %p36, %p37
      %p39 = scmp.ne.s32.totalorder %s30, %s31
      %p40 = scmp.eq.s32.totalorder %s25, 0
      %p41 = por %p39, %p40
      %p42 = scmp.ne.s32.totalorder %s30, %s31
      %p43 = scmp.eq.s32.totalorder %s26, 1
      %p44 = por %p42, %p43
      %p46 = scmp.ne.s32.totalorder %s31, %s45
      %p47 = scmp.eq.s32.totalorder %s26, 0
      %p48 = por %p46, %p47
      %s50 = sadd.s32 %s49, 1
      %p53 = scmp.eq.s32.totalorder %s20, 1
      %p54 = scmp.ne.s32.totalorder %s49, %s51
      %p55 = scmp.eq.s32.totalorder %s20, 0
      %p56 = por %p54, %p55
      %p57 = scmp.ne.s32.totalorder %s49, %s51
      %p58 = scmp.eq.s32.totalorder %s25, 1
      %p59 = por %p57, %p58
      %p60 = scmp.ne.s32.totalorder %s51, %s52
      %p61 = scmp.eq.s32.totalorder %s25, 0
      %p62 = por %p60, %p61
      %p63 = scmp.ne.s32.totalorder %s51, %s52
      %p64 = scmp.eq.s32.totalorder %s26, 1
      %p65 = por %p63, %p64
      %p67 = scmp.ne.s32.totalorder %s52, %s66
      %p68 = scmp.eq.s32.totalorder %s26, 0
      %p69 = por %p67, %p68
      %s70 = ssub.s32 %s20, %s27
      %p71 = scmp.eq.s32.totalorder %s70, 0
      %s73 = sadd.s32 %s72, 1
      %s74 = scalar_select %p71, %s72, %s73
      %p77 = pneg %p71
      %p78 = scmp.eq.s32.totalorder %s20, 1
      %p79 = por %p77, %p78
      %p80 = scmp.ne.s32.totalorder %s72, %s75
      %p81 = scmp.eq.s32.totalorder %s20, 0
      %p82 = por %p80, %p81
      %p83 = scmp.ne.s32.totalorder %s72, %s75
      %p84 = scmp.eq.s32.totalorder %s25, 1
      %p85 = por %p83, %p84
      %p86 = scmp.ne.s32.totalorder %s75, %s76
      %p87 = scmp.eq.s32.totalorder %s25, 0
      %p88 = por %p86, %p87
      %p89 = scmp.ne.s32.totalorder %s75, %s76
      %p90 = scmp.eq.s32.totalorder %s26, 1
      %p91 = por %p89, %p90
      %p93 = scmp.ne.s32.totalorder %s76, %s92
      %p94 = scmp.eq.s32.totalorder %s26, 0
      %p95 = por %p93, %p94
      %s96 = ssub.s32 %s20, %s27
      %p97 = scmp.eq.s32.totalorder %s96, 0
      %s99 = sadd.s32 %s98, 1
      %s100 = scalar_select %p97, %s98, %s99
      %p103 = pneg %p97
      %p104 = scmp.eq.s32.totalorder %s20, 1
      %p105 = por %p103, %p104
      %p106 = scmp.ne.s32.totalorder %s98, %s101
      %p107 = scmp.eq.s32.totalorder %s20, 0
      %p108 = por %p106, %p107
      %p109 = scmp.ne.s32.totalorder %s98, %s101
      %p110 = scmp.eq.s32.totalorder %s25, 1
      %p111 = por %p109, %p110
      %p112 = scmp.ne.s32.totalorder %s101, %s102
      %p113 = scmp.eq.s32.totalorder %s25, 0
      %p114 = por %p112, %p113
      %p115 = scmp.ne.s32.totalorder %s101, %s102
      %p116 = scmp.eq.s32.totalorder %s26, 1
      %p117 = por %p115, %p116
      %p119 = scmp.ne.s32.totalorder %s102, %s118
      %p120 = scmp.eq.s32.totalorder %s26, 0
      %p121 = por %p119, %p120
      %s122 = ssub.s32 %s20, %s27
      %p123 = scmp.eq.s32.totalorder %s122, 0
      %s125 = sadd.s32 %s124, 1
      %s126 = scalar_select %p123, %s124, %s125
      %p129 = pneg %p123
      %p130 = scmp.eq.s32.totalorder %s20, 1
      %p131 = por %p129, %p130
      %p132 = scmp.ne.s32.totalorder %s124, %s127
      %p133 = scmp.eq.s32.totalorder %s20, 0
      %p134 = por %p132, %p133
      %p135 = scmp.ne.s32.totalorder %s124, %s127
      %p136 = scmp.eq.s32.totalorder %s25, 1
      %p137 = por %p135, %p136
      %p138 = scmp.ne.s32.totalorder %s127, %s128
      %p139 = scmp.eq.s32.totalorder %s25, 0
      %p140 = por %p138, %p139
      %p141 = scmp.ne.s32.totalorder %s127, %s128
      %p142 = scmp.eq.s32.totalorder %s26, 1
      %p143 = por %p141, %p142
      %p145 = scmp.ne.s32.totalorder %s128, %s144
      %p146 = scmp.eq.s32.totalorder %s26, 0
      %p147 = por %p145, %p146
      %s148 = ssub.s32 %s20, %s27
      %p149 = scmp.eq.s32.totalorder %s148, 0
      %s151 = sadd.s32 %s150, 1
      %s152 = scalar_select %p149, %s150, %s151
      %p155 = pneg %p149
      %p156 = scmp.eq.s32.totalorder %s20, 1
      %p157 = por %p155, %p156
      %p158 = scmp.ne.s32.totalorder %s150, %s153
      %p159 = scmp.eq.s32.totalorder %s20, 0
      %p160 = por %p158, %p159
      %p161 = scmp.ne.s32.totalorder %s150, %s153
      %p162 = scmp.eq.s32.totalorder %s25, 1
      %p163 = por %p161, %p162
      %p164 = scmp.ne.s32.totalorder %s153, %s154
      %p165 = scmp.eq.s32.totalorder %s25, 0
      %p166 = por %p164, %p165
      %p167 = scmp.ne.s32.totalorder %s153, %s154
      %p168 = scmp.eq.s32.totalorder %s26, 1
      %p169 = por %p167, %p168
      %p171 = scmp.ne.s32.totalorder %s154, %s170
      %p172 = scmp.eq.s32.totalorder %s26, 0
      %p173 = por %p171, %p172
      %s174 = ssub.s32 %s20, %s27
      %p175 = scmp.eq.s32.totalorder %s174, 0
      %s177 = sadd.s32 %s176, 1
      %s178 = scalar_select %p175, %s176, %s177
      %p181 = pneg %p175
      %p182 = scmp.eq.s32.totalorder %s20, 1
      %p183 = por %p181, %p182
      %p184 = scmp.ne.s32.totalorder %s176, %s179
      %p185 = scmp.eq.s32.totalorder %s20, 0
      %p186 = por %p184, %p185
      %p187 = scmp.ne.s32.totalorder %s176, %s179
      %p188 = scmp.eq.s32.totalorder %s25, 1
      %p189 = por %p187, %p188
      %p190 = scmp.ne.s32.totalorder %s179, %s180
      %p191 = scmp.eq.s32.totalorder %s25, 0
      %p192 = por %p190, %p191
      %p193 = scmp.ne.s32.totalorder %s179, %s180
      %p194 = scmp.eq.s32.totalorder %s26, 1
      %p195 = por %p193, %p194
      %p197 = scmp.ne.s32.totalorder %s180, %s196
      %p198 = scmp.eq.s32.totalorder %s26, 0
      %p199 = por %p197, %p198
      %s200 = ssub.s32 %s20, %s27
      %p201 = scmp.eq.s32.totalorder %s200, 0
      %s203 = sadd.s32 %s202, 1
      %s204 = scalar_select %p201, %s202, %s203
      %p207 = pneg %p201
      %p208 = scmp.eq.s32.totalorder %s20, 1
      %p209 = por %p207, %p208
      %p210 = scmp.ne.s32.totalorder %s202, %s205
      %p211 = scmp.eq.s32.totalorder %s20, 0
      %p212 = por %p210, %p211
      %p213 = scmp.ne.s32.totalorder %s202, %s205
      %p214 = scmp.eq.s32.totalorder %s25, 1
      %p215 = por %p213, %p214
      %p216 = scmp.ne.s32.totalorder %s205, %s206
      %p217 = scmp.eq.s32.totalorder %s25, 0
      %p218 = por %p216, %p217
      %p219 = scmp.ne.s32.totalorder %s205, %s206
      %p220 = scmp.eq.s32.totalorder %s26, 1
      %p221 = por %p219, %p220
      %p223 = scmp.ne.s32.totalorder %s206, %s222
      %p224 = scmp.eq.s32.totalorder %s26, 0
      %p225 = por %p223, %p224
      %s226 = ssub.s32 %s20, %s27
      %p227 = scmp.eq.s32.totalorder %s226, 0
      %s229 = sadd.s32 %s228, 1
      %s230 = scalar_select %p227, %s228, %s229
      %p233 = pneg %p227
      %p234 = scmp.eq.s32.totalorder %s20, 1
      %p235 = por %p233, %p234
      %p236 = scmp.ne.s32.totalorder %s228, %s231
      %p237 = scmp.eq.s32.totalorder %s20, 0
      %p238 = por %p236, %p237
      %p239 = scmp.ne.s32.totalorder %s228, %s231
      %p240 = scmp.eq.s32.totalorder %s25, 1
      %p241 = por %p239, %p240
      %p242 = scmp.ne.s32.totalorder %s231, %s232
      %p243 = scmp.eq.s32.totalorder %s25, 0
      %p244 = por %p242, %p243
      %p245 = scmp.ne.s32.totalorder %s231, %s232
      %p246 = scmp.eq.s32.totalorder %s26, 1
      %p247 = por %p245, %p246
      %p249 = scmp.ne.s32.totalorder %s232, %s248
      %p250 = scmp.eq.s32.totalorder %s26, 0
      %p251 = por %p249, %p250
      %s253 = sadd.s32 %s252, 1
      %p256 = scmp.eq.s32.totalorder %s20, 1
      %p257 = scmp.ne.s32.totalorder %s252, %s254
      %p258 = scmp.eq.s32.totalorder %s20, 0
      %p259 = por %p257, %p258
      %p260 = scmp.ne.s32.totalorder %s252, %s254
      %p261 = scmp.eq.s32.totalorder %s25, 1
      %p262 = por %p260, %p261
      %p263 = scmp.ne.s32.totalorder %s254, %s255
      %p264 = scmp.eq.s32.totalorder %s25, 0
      %p265 = por %p263, %p264
      %p266 = scmp.ne.s32.totalorder %s254, %s255
      %p267 = scmp.eq.s32.totalorder %s26, 1
      %p268 = por %p266, %p267
      %p270 = scmp.ne.s32.totalorder %s255, %s269
      %p271 = scmp.eq.s32.totalorder %s26, 0
      %p272 = por %p270, %p271
      %s274 = sadd.s32 %s273, 1
      %p277 = scmp.eq.s32.totalorder %s20, 1
      %p278 = scmp.ne.s32.totalorder %s273, %s275
      %p279 = scmp.eq.s32.totalorder %s20, 0
      %p280 = por %p278, %p279
      %p281 = scmp.ne.s32.totalorder %s273, %s275
      %p282 = scmp.eq.s32.totalorder %s25, 1
      %p283 = por %p281, %p282
      %p284 = scmp.ne.s32.totalorder %s275, %s276
      %p285 = scmp.eq.s32.totalorder %s25, 0
      %p286 = por %p284, %p285
      %p287 = scmp.ne.s32.totalorder %s275, %s276
      %p288 = scmp.eq.s32.totalorder %s26, 1
      %p289 = por %p287, %p288
      %p291 = scmp.ne.s32.totalorder %s276, %s290
      %p292 = scmp.eq.s32.totalorder %s26, 0
      %p293 = por %p291, %p292
      %p294 = scmp.le.s32.totalorder 1, %s20
      %p295 = scmp.lt.s32.totalorder %s20, 3
      %p296 = pnand %p294, %p295
      %p297 = pneg %p296
      // Predicated region
      $region9: #{tpu_custom_call.1} parent=5 // pred_check
        _
      $region10: #{tpu_custom_call.1} parent=5 // pred_check_branch
        %299 = sbr.rel (%p296) target = $region12
      $region11: #{tpu_custom_call.1} parent=5 // pred_region
        %s300 = ssub.s32 %s20, 1
        // Predicated region
        $region13: #{tpu_custom_call.1} parent=11 // pred_check
          %p301 = pneg %p41
        $region14: #{tpu_custom_call.1} parent=11 // pred_check_branch
          %303 = sbr.rel (%p301) target = $region16
        $region15: #{tpu_custom_call.1} parent=11 // pred_region
          _
        $region16: #{tpu_custom_call.1} parent=11 // pred_fallthru
          _
        // Predicated region
        $region17: #{tpu_custom_call.1} parent=11 // pred_check
          %p304 = pneg %p62
        $region18: #{tpu_custom_call.1} parent=11 // pred_check_branch
          %306 = sbr.rel (%p304) target = $region20
        $region19: #{tpu_custom_call.1} parent=11 // pred_region
          %s308 = ssub.s32 256, 256
          %309 = vsyncadd [#allocation4], %s308
          %s310 = sshll.u32 [#allocation3], 4
          %s311 = int_to_ptr.vmem [resolvable:$true] %s310
          %316 = dma.hbm_to_vmem [thread:$0]  %s1, 256, %s311, [#allocation4], 128, 128, 8
        $region20: #{tpu_custom_call.1} parent=11 // pred_fallthru
          _
      $region12: #{tpu_custom_call.1} parent=5 // pred_fallthru
        _
      %p317 = scmp.lt.s32.totalorder %s20, 2
      // Predicated region
      $region21: #{tpu_custom_call.1} parent=5 // pred_check
        %p318 = pneg %p317
      $region22: #{tpu_custom_call.1} parent=5 // pred_check_branch
        %320 = sbr.rel (%p318) target = $region24
      $region23: #{tpu_custom_call.1} parent=5 // pred_region
        // Predicated region
        $region25: #{tpu_custom_call.1} parent=23 // pred_check
          %p321 = pneg %p82
        $region26: #{tpu_custom_call.1} parent=23 // pred_check_branch
          %323 = sbr.rel (%p321) target = $region28
        $region27: #{tpu_custom_call.1} parent=23 // pred_region
          %p324 = scmp.lt.s32.totalorder %s20, 1
          %s325 = scalar_select %p324, %s20, 1
          %s326 = smul.addr %s325, 4
          %s327 = smul.addr %s326, 8
          %s328 = scalar_lea.vmem %s2, %s327
        $region28: #{tpu_custom_call.1} parent=23 // pred_fallthru
          _
        // Predicated region
        $region29: #{tpu_custom_call.1} parent=23 // pred_check
          %p329 = pneg %p108
        $region30: #{tpu_custom_call.1} parent=23 // pred_check_branch
          %331 = sbr.rel (%p329) target = $region32
        $region31: #{tpu_custom_call.1} parent=23 // pred_region
          %p332 = scmp.lt.s32.totalorder %s20, 1
          %s333 = scalar_select %p332, %s20, 1
          %s334 = scalar_lea.vmem %s3, %s333
        $region32: #{tpu_custom_call.1} parent=23 // pred_fallthru
          _
        // Predicated region
        $region33: #{tpu_custom_call.1} parent=23 // pred_check
          %p335 = pneg %p134
        $region34: #{tpu_custom_call.1} parent=23 // pred_check_branch
          %337 = sbr.rel (%p335) target = $region36
        $region35: #{tpu_custom_call.1} parent=23 // pred_region
          %p338 = scmp.lt.s32.totalorder %s20, 1
          %s339 = scalar_select %p338, %s20, 1
          %s340 = smul.addr %s339, 4
          %s341 = smul.addr %s340, 8
          %s342 = scalar_lea.vmem %s4, %s341
        $region36: #{tpu_custom_call.1} parent=23 // pred_fallthru
          _
        // Predicated region
        $region37: #{tpu_custom_call.1} parent=23 // pred_check
          %p343 = pneg %p160
        $region38: #{tpu_custom_call.1} parent=23 // pred_check_branch
          %345 = sbr.rel (%p343) target = $region40
        $region39: #{tpu_custom_call.1} parent=23 // pred_region
          %p346 = scmp.lt.s32.totalorder %s20, 1
          %s347 = scalar_select %p346, %s20, 1
          %s348 = smul.addr %s347, 4
          %s349 = smul.addr %s348, 8
          %s350 = scalar_lea.vmem %s5, %s349
        $region40: #{tpu_custom_call.1} parent=23 // pred_fallthru
          _
        // Predicated region
        $region41: #{tpu_custom_call.1} parent=23 // pred_check
          %p351 = pneg %p186
        $region42: #{tpu_custom_call.1} parent=23 // pred_check_branch
          %353 = sbr.rel (%p351) target = $region44
        $region43: #{tpu_custom_call.1} parent=23 // pred_region
          %p354 = scmp.lt.s32.totalorder %s20, 1
          %s355 = scalar_select %p354, %s20, 1
          %s356 = scalar_lea.vmem %s6, %s355
        $region44: #{tpu_custom_call.1} parent=23 // pred_fallthru
          _
        // Predicated region
        $region45: #{tpu_custom_call.1} parent=23 // pred_check
          %p357 = pneg %p212
        $region46: #{tpu_custom_call.1} parent=23 // pred_check_branch
          %359 = sbr.rel (%p357) target = $region48
        $region47: #{tpu_custom_call.1} parent=23 // pred_region
          %p360 = scmp.lt.s32.totalorder %s20, 1
          %s361 = scalar_select %p360, %s20, 1
          %s362 = smul.addr %s361, 8
          %s363 = smul.addr %s362, 8
          %s364 = scalar_lea.vmem %s7, %s363
        $region48: #{tpu_custom_call.1} parent=23 // pred_fallthru
          _
        // Predicated region
        $region49: #{tpu_custom_call.1} parent=23 // pred_check
          %p365 = pneg %p238
        $region50: #{tpu_custom_call.1} parent=23 // pred_check_branch
          %367 = sbr.rel (%p365) target = $region52
        $region51: #{tpu_custom_call.1} parent=23 // pred_region
          %p368 = scmp.lt.s32.totalorder %s20, 1
          %s369 = scalar_select %p368, %s20, 1
          %s370 = smul.addr %s369, 8
          %s371 = scalar_lea.vmem %s8, %s370
        $region52: #{tpu_custom_call.1} parent=23 // pred_fallthru
          _
      $region24: #{tpu_custom_call.1} parent=5 // pred_fallthru
        _
      %p372 = scmp.le.s32.totalorder 1, %s20
      %p373 = scmp.lt.s32.totalorder %s20, 3
      %p374 = pnand %p372, %p373
      %p375 = pneg %p374
      // Predicated region
      $region53: #{tpu_custom_call.1} parent=5 // pred_check
        _
      $region54: #{tpu_custom_call.1} parent=5 // pred_check_branch
        %377 = sbr.rel (%p374) target = $region56
      $region55: #{tpu_custom_call.1} parent=5 // pred_region
        %s378 = ssub.s32 %s20, 1
        // Predicated region
        $region57: #{tpu_custom_call.1} parent=55 // pred_check
          %p379 = pneg %p62
        $region58: #{tpu_custom_call.1} parent=55 // pred_check_branch
          %381 = sbr.rel (%p379) target = $region60
        $region59: #{tpu_custom_call.1} parent=55 // pred_region
          %382 = dma.done [#allocation4], 256
        $region60: #{tpu_custom_call.1} parent=55 // pred_fallthru
          _
        %p383 = pneg %p41
        %p384 = pneg %p38
        %p385 = pneg %p62
        %p386 = pneg %p59
        %p387 = scmp.lt.s32.totalorder %s25, 1
        %s388 = scalar_select %p387, %s25, 1
        %s389 = smul.addr %s388, 4
        %s390 = smul.addr %s389, 8
        %s391 = scalar_lea.vmem %s2, %s390
        %p392 = pneg %p88
        %p393 = pneg %p85
        %p394 = scmp.lt.s32.totalorder %s25, 1
        %s395 = scalar_select %p394, %s25, 1
        %s396 = scalar_lea.vmem %s3, %s395
        %p397 = pneg %p114
        %p398 = pneg %p111
        %p399 = scmp.lt.s32.totalorder %s25, 1
        %s400 = scalar_select %p399, %s25, 1
        %s401 = smul.addr %s400, 4
        %s402 = smul.addr %s401, 8
        %s403 = scalar_lea.vmem %s4, %s402
        %p404 = pneg %p140
        %p405 = pneg %p137
        %p406 = scmp.lt.s32.totalorder %s25, 1
        %s407 = scalar_select %p406, %s25, 1
        %s408 = smul.addr %s407, 4
        %s409 = smul.addr %s408, 8
        %s410 = scalar_lea.vmem %s5, %s409
        %p411 = pneg %p166
        %p412 = pneg %p163
        %p413 = scmp.lt.s32.totalorder %s25, 1
        %s414 = scalar_select %p413, %s25, 1
        %s415 = scalar_lea.vmem %s6, %s414
        %p416 = pneg %p192
        %p417 = pneg %p189
        %p418 = scmp.lt.s32.totalorder %s25, 1
        %s419 = scalar_select %p418, %s25, 1
        %s420 = smul.addr %s419, 8
        %s421 = smul.addr %s420, 8
        %s422 = scalar_lea.vmem %s7, %s421
        %p423 = pneg %p218
        %p424 = pneg %p215
        %p425 = scmp.lt.s32.totalorder %s25, 1
        %s426 = scalar_select %p425, %s25, 1
        %s427 = smul.addr %s426, 8
        %s428 = scalar_lea.vmem %s8, %s427
        %p429 = pneg %p244
        %p430 = pneg %p241
        %p431 = pneg %p265
        %p432 = pneg %p262
        %p433 = pneg %p286
        %p434 = pneg %p283
        %p435 = scmp.lt.s32.totalorder %s25, 1
        %s436 = scalar_select %p435, %s25, 1
        %s437 = smul.addr %s436, 4
        %s438 = smul.addr %s437, 8
        %s439 = scalar_lea.vmem %s2, %s438
        %p440 = scmp.lt.s32.totalorder %s25, 1
        %s441 = scalar_select %p440, %s25, 1
        %s442 = scalar_lea.vmem %s3, %s441
        %p443 = scmp.lt.s32.totalorder %s25, 1
        %s444 = scalar_select %p443, %s25, 1
        %s445 = smul.addr %s444, 4
        %s446 = smul.addr %s445, 8
        %s447 = scalar_lea.vmem %s4, %s446
        %p448 = scmp.lt.s32.totalorder %s25, 1
        %s449 = scalar_select %p448, %s25, 1
        %s450 = smul.addr %s449, 4
        %s451 = smul.addr %s450, 8
        %s452 = scalar_lea.vmem %s5, %s451
        %p453 = scmp.lt.s32.totalorder %s25, 1
        %s454 = scalar_select %p453, %s25, 1
        %s455 = scalar_lea.vmem %s6, %s454
        %p456 = scmp.lt.s32.totalorder %s25, 1
        %s457 = scalar_select %p456, %s25, 1
        %s458 = smul.addr %s457, 8
        %s459 = smul.addr %s458, 8
        %s460 = scalar_lea.vmem %s7, %s459
        %p461 = scmp.lt.s32.totalorder %s25, 1
        %s462 = scalar_select %p461, %s25, 1
        %s463 = smul.addr %s462, 8
        %s464 = scalar_lea.vmem %s8, %s463
        %p465 = scmp.eq.s32.totalorder %s25, 0
        // Predicated region
        $region61: #{tpu_custom_call.1} parent=55 // pred_check
          %p466 = pneg %p465
        $region62: #{tpu_custom_call.1} parent=55 // pred_check_branch
          %468 = sbr.rel (%p466) target = $region64
        $region63: #{tpu_custom_call.1} parent=55 // pred_region
          %v469 = vld [vmem:[%s0] sm:$0xff]
          %v470 = vld [vmem:[%s0 + $0x8] sm:$0xff]
          %vm471 = vcmask 261120
          %472 = vst.msk [vmem:[#allocation2] sm:$0xff] %vm471, %v469
          %473 = vst.msk [vmem:[#allocation2 + $0x8] sm:$0xff] %vm471, %v470
        $region64: #{tpu_custom_call.1} parent=55 // pred_fallthru
          _
        %v474 = vld [vmem:[#allocation2] sm:$0xff]
        %v475 = vld [vmem:[#allocation2 + $0x8] sm:$0xff]
        %v476 = vld [vmem:[#allocation3] sm:$0xff]
        %v477 = vld [vmem:[#allocation3 + $0x8] sm:$0xff]
        %v478 = vld [vmem:[%s464] sm:$0x3f]
        %v479 = vld [vmem:[%s439] sm:$0xff]
        %v480 = vld [vmem:[%s439 + $0x8] sm:$0xff]
        %v481 = vld [vmem:[%s439 + $0x10] sm:$0xff]
        %v482 = vld [vmem:[%s439 + $0x18] sm:$0xff]
        %v483 = vld [vmem:[%s442] sm:$0x1]
        %v485 = vlaneseq
        %v486 = vshrl.u32 %v485, 7
        %v487 = vsub.s32 0, %v486
        %v488 = vrot.slane %v483, %v487
        %vm490 = vcmask 261120
        %v492 = vsel %vm490, %v474, 0
        %v495 = vsel %vm490, %v475, 0
        %497 = vmatprep.subr.mxu0 0.0
        %498 = vmatpush1.msra.mxu0 %v479
        %499 = vmatprep.subr.mxu0 0.0
        %500 = vmatpush1.msra.mxu0 %v480
        %501 = vmatprep.subr.mxu0 0.0
        %502 = vmatpush1.msra.mxu0 %v481
        %503 = vmatprep.subr.mxu0 0.0
        %504 = vmatpush1.msra.mxu0 %v482
        %505 = vmatprep.subr.mxu0 0.0
        %506 = vmatpush1.msra.mxu0 0.0
        %507 = vmatprep.subr.mxu0 0.0
        %508 = vmatpush1.msra.mxu0 0.0
        %509 = vmatprep.subr.mxu0 0.0
        %510 = vmatpush1.msra.mxu0 0.0
        %511 = vmatprep.subr.mxu0 0.0
        %512 = vmatpush1.msra.mxu0 0.0
        %513 = vmatprep.subr.mxu0 0.0
        %514 = vmatpush1.msra.mxu0 0.0
        %515 = vmatprep.subr.mxu0 0.0
        %516 = vmatpush1.msra.mxu0 0.0
        %517 = vmatprep.subr.mxu0 0.0
        %518 = vmatpush1.msra.mxu0 0.0
        %519 = vmatprep.subr.mxu0 0.0
        %520 = vmatpush1.msra.mxu0 0.0
        %521 = vmatprep.subr.mxu0 0.0
        %522 = vmatpush1.msra.mxu0 0.0
        %523 = vmatprep.subr.mxu0 0.0
        %524 = vmatpush1.msra.mxu0 0.0
        %525 = vmatprep.subr.mxu0 0.0
        %526 = vmatpush1.msra.mxu0 0.0
        %527 = vmatprep.subr.mxu0 0.0
        %528 = vmatpush1.msra.mxu0 0.0
        %529 = vmatprep.subr.mxu0 0.0
        %530 = vmatpush1.msra.mxu0 0.0
        %531 = vmatprep.subr.mxu0 0.0
        %532 = vmatpush1.msra.mxu0 0.0
        %533 = vmatprep.subr.mxu0 0.0
        %534 = vmatpush1.msra.mxu0 0.0
        %535 = vmatprep.subr.mxu0 0.0
        %536 = vmatpush1.msra.mxu0 0.0
        %537 = vmatprep.subr.mxu0 0.0
        %538 = vmatpush1.msra.mxu0 0.0
        %539 = vmatprep.subr.mxu0 0.0
        %540 = vmatpush1.msra.mxu0 0.0
        %541 = vmatprep.subr.mxu0 0.0
        %542 = vmatpush1.msra.mxu0 0.0
        %543 = vmatprep.subr.mxu0 0.0
        %544 = vmatpush1.msra.mxu0 0.0
        %545 = vmatprep.subr.mxu0 0.0
        %546 = vmatpush1.msra.mxu0 0.0
        %547 = vmatprep.subr.mxu0 0.0
        %548 = vmatpush1.msra.mxu0 0.0
        %549 = vmatprep.subr.mxu0 0.0
        %550 = vmatpush1.msra.mxu0 0.0
        %551 = vmatprep.subr.mxu0 0.0
        %552 = vmatpush1.msra.mxu0 0.0
        %553 = vmatprep.subr.mxu0 0.0
        %554 = vmatpush1.msra.mxu0 0.0
        %555 = vmatprep.subr.mxu0 0.0
        %556 = vmatpush1.msra.mxu0 0.0
        %557 = vmatprep.subr.mxu0 0.0
        %558 = vmatpush1.msra.mxu0 0.0
        %559 = vmatprep.subr.mxu0 0.0
        %560 = vmatpush1.msra.mxu0 0.0
        %561 = vmatprep.mubr.f32.mxu0 0.0
        %562 = vmatmul.mubr.f32.gmra.mrb[0].mxu0 %v492
        %v563 = vpop.f32.mrb[0].mxu0
        %v564 = vadd.f32 %v488, %v563
        %v565 = vpop.f32.mrb[0].mxu0
        %566 = vmatprep.mubr.f32.mxu0 0.0
        %567 = vmatmul.mubr.f32.gmra.mrb[0].mxu0 %v495
        %v568 = vpop.f32.mrb[0].mxu0
        %v569 = vadd.f32 %v488, %v568
        %v570 = vpop.f32.mrb[0].mxu0
        %571 = vdwg.mxu0
        %573 = vrot.lane.b32.xlu0 %v564, 96
        %v574 = vpop.permute.xlu0 %573
        %vm575 = vcmask 64512
        %v576 = vsel %vm575, %v564, 0
        %v578 = vsel %vm575, %v574, 0
        %580 = vmatprep.subr.mxu0 0.0
        %581 = vmatpush1.xpose.msra.mxu0 %v578
        %582 = vmatprep.subr.mxu0 0.0
        %583 = vmatpush1.xpose.msra.mxu0 0.0
        %584 = vmatprep.subr.mxu0 0.0
        %585 = vmatpush1.xpose.msra.mxu0 0.0
        %586 = vmatprep.subr.mxu0 0.0
        %587 = vmatpush1.xpose.msra.mxu0 0.0
        %588 = vmatprep.subr.mxu0 0.0
        %589 = vmatpush1.xpose.msra.mxu0 0.0
        %590 = vmatprep.subr.mxu0 0.0
        %591 = vmatpush1.xpose.msra.mxu0 0.0
        %592 = vmatprep.subr.mxu0 0.0
        %593 = vmatpush1.xpose.msra.mxu0 0.0
        %594 = vmatprep.subr.mxu0 0.0
        %595 = vmatpush1.xpose.msra.mxu0 0.0
        %596 = vmatprep.subr.mxu0 0.0
        %597 = vmatpush1.xpose.msra.mxu0 0.0
        %598 = vmatprep.subr.mxu0 0.0
        %599 = vmatpush1.xpose.msra.mxu0 0.0
        %600 = vmatprep.subr.mxu0 0.0
        %601 = vmatpush1.xpose.msra.mxu0 0.0
        %602 = vmatprep.subr.mxu0 0.0
        %603 = vmatpush1.xpose.msra.mxu0 0.0
        %604 = vmatprep.subr.mxu0 0.0
        %605 = vmatpush1.xpose.msra.mxu0 0.0
        %606 = vmatprep.subr.mxu0 0.0
        %607 = vmatpush1.xpose.msra.mxu0 0.0
        %608 = vmatprep.subr.mxu0 0.0
        %609 = vmatpush1.xpose.msra.mxu0 0.0
        %610 = vmatprep.subr.mxu0 0.0
        %611 = vmatpush1.xpose.msra.mxu0 0.0
        %612 = vmatprep.subr.mxu0 0.0
        %613 = vmatpush1.xpose.msra.mxu0 0.0
        %614 = vmatprep.subr.mxu0 0.0
        %615 = vmatpush1.xpose.msra.mxu0 0.0
        %616 = vmatprep.subr.mxu0 0.0
        %617 = vmatpush1.xpose.msra.mxu0 0.0
        %618 = vmatprep.subr.mxu0 0.0
        %619 = vmatpush1.xpose.msra.mxu0 0.0
        %620 = vmatprep.subr.mxu0 0.0
        %621 = vmatpush1.xpose.msra.mxu0 0.0
        %622 = vmatprep.subr.mxu0 0.0
        %623 = vmatpush1.xpose.msra.mxu0 0.0
        %624 = vmatprep.subr.mxu0 0.0
        %625 = vmatpush1.xpose.msra.mxu0 0.0
        %626 = vmatprep.subr.mxu0 0.0
        %627 = vmatpush1.xpose.msra.mxu0 0.0
        %628 = vmatprep.subr.mxu0 0.0
        %629 = vmatpush1.xpose.msra.mxu0 0.0
        %630 = vmatprep.subr.mxu0 0.0
        %631 = vmatpush1.xpose.msra.mxu0 0.0
        %632 = vmatprep.subr.mxu0 0.0
        %633 = vmatpush1.xpose.msra.mxu0 0.0
        %634 = vmatprep.subr.mxu0 0.0
        %635 = vmatpush1.xpose.msra.mxu0 0.0
        %636 = vmatprep.subr.mxu0 0.0
        %637 = vmatpush1.xpose.msra.mxu0 0.0
        %638 = vmatprep.subr.mxu0 0.0
        %639 = vmatpush1.xpose.msra.mxu0 0.0
        %640 = vmatprep.subr.mxu0 0.0
        %641 = vmatpush1.xpose.msra.mxu0 0.0
        %642 = vmatprep.subr.mxu0 0.0
        %643 = vmatpush1.xpose.msra.mxu0 0.0
        %644 = vmatprep.mubr.f32.mxu0 0.0
        %645 = vmatmul.mubr.f32.gmra.mrb[0].mxu0 %v576
        %v646 = vpop.f32.mrb[0].mxu0
        %v647 = vadd.f32 0.0, %v646
        %v648 = vpop.f32.mrb[0].mxu0
        %649 = vdwg.mxu0
        %651 = vrot.lane.b32.xlu0 %v569, 96
        %v652 = vpop.permute.xlu0 %651
        %v653 = vsel %vm575, %v569, 0
        %v655 = vsel %vm575, %v652, 0
        %657 = vmatprep.subr.mxu0 0.0
        %658 = vmatpush1.xpose.msra.mxu0 %v655
        %659 = vmatprep.subr.mxu0 0.0
        %660 = vmatpush1.xpose.msra.mxu0 0.0
        %661 = vmatprep.subr.mxu0 0.0
        %662 = vmatpush1.xpose.msra.mxu0 0.0
        %663 = vmatprep.subr.mxu0 0.0
        %664 = vmatpush1.xpose.msra.mxu0 0.0
        %665 = vmatprep.subr.mxu0 0.0
        %666 = vmatpush1.xpose.msra.mxu0 0.0
        %667 = vmatprep.subr.mxu0 0.0
        %668 = vmatpush1.xpose.msra.mxu0 0.0
        %669 = vmatprep.subr.mxu0 0.0
        %670 = vmatpush1.xpose.msra.mxu0 0.0
        %671 = vmatprep.subr.mxu0 0.0
        %672 = vmatpush1.xpose.msra.mxu0 0.0
        %673 = vmatprep.subr.mxu0 0.0
        %674 = vmatpush1.xpose.msra.mxu0 0.0
        %675 = vmatprep.subr.mxu0 0.0
        %676 = vmatpush1.xpose.msra.mxu0 0.0
        %677 = vmatprep.subr.mxu0 0.0
        %678 = vmatpush1.xpose.msra.mxu0 0.0
        %679 = vmatprep.subr.mxu0 0.0
        %680 = vmatpush1.xpose.msra.mxu0 0.0
        %681 = vmatprep.subr.mxu0 0.0
        %682 = vmatpush1.xpose.msra.mxu0 0.0
        %683 = vmatprep.subr.mxu0 0.0
        %684 = vmatpush1.xpose.msra.mxu0 0.0
        %685 = vmatprep.subr.mxu0 0.0
        %686 = vmatpush1.xpose.msra.mxu0 0.0
        %687 = vmatprep.subr.mxu0 0.0
        %688 = vmatpush1.xpose.msra.mxu0 0.0
        %689 = vmatprep.subr.mxu0 0.0
        %690 = vmatpush1.xpose.msra.mxu0 0.0
        %691 = vmatprep.subr.mxu0 0.0
        %692 = vmatpush1.xpose.msra.mxu0 0.0
        %693 = vmatprep.subr.mxu0 0.0
        %694 = vmatpush1.xpose.msra.mxu0 0.0
        %695 = vmatprep.subr.mxu0 0.0
        %696 = vmatpush1.xpose.msra.mxu0 0.0
        %697 = vmatprep.subr.mxu0 0.0
        %698 = vmatpush1.xpose.msra.mxu0 0.0
        %699 = vmatprep.subr.mxu0 0.0
        %700 = vmatpush1.xpose.msra.mxu0 0.0
        %701 = vmatprep.subr.mxu0 0.0
        %702 = vmatpush1.xpose.msra.mxu0 0.0
        %703 = vmatprep.subr.mxu0 0.0
        %704 = vmatpush1.xpose.msra.mxu0 0.0
        %705 = vmatprep.subr.mxu0 0.0
        %706 = vmatpush1.xpose.msra.mxu0 0.0
        %707 = vmatprep.subr.mxu0 0.0
        %708 = vmatpush1.xpose.msra.mxu0 0.0
        %709 = vmatprep.subr.mxu0 0.0
        %710 = vmatpush1.xpose.msra.mxu0 0.0
        %711 = vmatprep.subr.mxu0 0.0
        %712 = vmatpush1.xpose.msra.mxu0 0.0
        %713 = vmatprep.subr.mxu0 0.0
        %714 = vmatpush1.xpose.msra.mxu0 0.0
        %715 = vmatprep.subr.mxu0 0.0
        %716 = vmatpush1.xpose.msra.mxu0 0.0
        %717 = vmatprep.subr.mxu0 0.0
        %718 = vmatpush1.xpose.msra.mxu0 0.0
        %719 = vmatprep.subr.mxu0 0.0
        %720 = vmatpush1.xpose.msra.mxu0 0.0
        %721 = vmatprep.mubr.f32.mxu0 0.0
        %722 = vmatmul.mubr.f32.gmra.mrb[0].mxu0 %v653
        %v723 = vpop.f32.mrb[0].mxu0
        %v724 = vadd.f32 0.0, %v723
        %v725 = vpop.f32.mrb[0].mxu0
        %726 = vdwg.mxu0
        %v727 = vmul.f32 %v647, 0.35355338
        %v728 = vmul.f32 %v724, 0.35355338
        %v729 = vadd.f32 %v727, %v476
        %v730 = vadd.f32 %v728, %v477
        %v731 = vsel %vm575, %v729, -inf
        %732 = vmax.xlane.f32.xlu0 %v731
        %v733 = vpop.xlane.xlu0 %732
        %v734 = vsel %vm575, %v730, -inf
        %735 = vmax.xlane.f32.xlu0 %v734
        %v736 = vpop.xlane.xlu0 %735
        %v737 = vsub.f32 %v729, %v733
        %v738 = vsub.f32 %v730, %v736
        %v739 = vmul.f32 %v737, 1.442695
        %v740 = vpow.pop %v739
        %v741 = vmul.f32 %v738, 1.442695
        %v742 = vpow.pop %v741
        %v743 = vsel %vm575, %v740, 0.0
        %744 = vadd.xlane.f32.xlu0 %v743
        %v745 = vpop.xlane.xlu0 %744
        %v746 = vsel %vm575, %v742, 0.0
        %747 = vadd.xlane.f32.xlu0 %v746
        %v748 = vpop.xlane.xlu0 %747
        %v749 = vrcp.pop %v745
        %v750 = vrcp.pop %v748
        %v751 = vmul.f32 %v740, %v749
        %v752 = vmul.f32 %v742, %v750
        %753 = vrot.lane.b32.xlu0 %v564, 64
        %v754 = vpop.permute.xlu0 %753
        %v757 = vsel %vm575, %v751, 0
        %759 = vmatprep.subr.mxu0 0.0
        %760 = vmatpush1.msra.mxu0 %v754
        %761 = vmatprep.subr.mxu0 0.0
        %762 = vmatpush1.msra.mxu0 0.0
        %763 = vmatprep.subr.mxu0 0.0
        %764 = vmatpush1.msra.mxu0 0.0
        %765 = vmatprep.subr.mxu0 0.0
        %766 = vmatpush1.msra.mxu0 0.0
        %767 = vmatprep.subr.mxu0 0.0
        %768 = vmatpush1.msra.mxu0 0.0
        %769 = vmatprep.subr.mxu0 0.0
        %770 = vmatpush1.msra.mxu0 0.0
        %771 = vmatprep.subr.mxu0 0.0
        %772 = vmatpush1.msra.mxu0 0.0
        %773 = vmatprep.subr.mxu0 0.0
        %774 = vmatpush1.msra.mxu0 0.0
        %775 = vmatprep.subr.mxu0 0.0
        %776 = vmatpush1.msra.mxu0 0.0
        %777 = vmatprep.subr.mxu0 0.0
        %778 = vmatpush1.msra.mxu0 0.0
        %779 = vmatprep.subr.mxu0 0.0
        %780 = vmatpush1.msra.mxu0 0.0
        %781 = vmatprep.subr.mxu0 0.0
        %782 = vmatpush1.msra.mxu0 0.0
        %783 = vmatprep.subr.mxu0 0.0
        %784 = vmatpush1.msra.mxu0 0.0
        %785 = vmatprep.subr.mxu0 0.0
        %786 = vmatpush1.msra.mxu0 0.0
        %787 = vmatprep.subr.mxu0 0.0
        %788 = vmatpush1.msra.mxu0 0.0
        %789 = vmatprep.subr.mxu0 0.0
        %790 = vmatpush1.msra.mxu0 0.0
        %791 = vmatprep.subr.mxu0 0.0
        %792 = vmatpush1.msra.mxu0 0.0
        %793 = vmatprep.subr.mxu0 0.0
        %794 = vmatpush1.msra.mxu0 0.0
        %795 = vmatprep.subr.mxu0 0.0
        %796 = vmatpush1.msra.mxu0 0.0
        %797 = vmatprep.subr.mxu0 0.0
        %798 = vmatpush1.msra.mxu0 0.0
        %799 = vmatprep.subr.mxu0 0.0
        %800 = vmatpush1.msra.mxu0 0.0
        %801 = vmatprep.subr.mxu0 0.0
        %802 = vmatpush1.msra.mxu0 0.0
        %803 = vmatprep.subr.mxu0 0.0
        %804 = vmatpush1.msra.mxu0 0.0
        %805 = vmatprep.subr.mxu0 0.0
        %806 = vmatpush1.msra.mxu0 0.0
        %807 = vmatprep.subr.mxu0 0.0
        %808 = vmatpush1.msra.mxu0 0.0
        %809 = vmatprep.subr.mxu0 0.0
        %810 = vmatpush1.msra.mxu0 0.0
        %811 = vmatprep.subr.mxu0 0.0
        %812 = vmatpush1.msra.mxu0 0.0
        %813 = vmatprep.subr.mxu0 0.0
        %814 = vmatpush1.msra.mxu0 0.0
        %815 = vmatprep.subr.mxu0 0.0
        %816 = vmatpush1.msra.mxu0 0.0
        %817 = vmatprep.subr.mxu0 0.0
        %818 = vmatpush1.msra.mxu0 0.0
        %819 = vmatprep.subr.mxu0 0.0
        %820 = vmatpush1.msra.mxu0 0.0
        %821 = vmatprep.subr.mxu0 0.0
        %822 = vmatpush1.msra.mxu0 0.0
        %823 = vmatprep.mubr.f32.mxu0 0.0
        %824 = vmatmul.mubr.f32.gmra.mrb[0].mxu0 %v757
        %v825 = vpop.f32.mrb[0].mxu0
        %v826 = vadd.f32 0.0, %v825
        %v827 = vpop.f32.mrb[0].mxu0
        %828 = vdwg.mxu0
        %829 = vrot.lane.b32.xlu0 %v569, 64
        %v830 = vpop.permute.xlu0 %829
        %v833 = vsel %vm575, %v752, 0
        %835 = vmatprep.subr.mxu0 0.0
        %836 = vmatpush1.msra.mxu0 %v830
        %837 = vmatprep.subr.mxu0 0.0
        %838 = vmatpush1.msra.mxu0 0.0
        %839 = vmatprep.subr.mxu0 0.0
        %840 = vmatpush1.msra.mxu0 0.0
        %841 = vmatprep.subr.mxu0 0.0
        %842 = vmatpush1.msra.mxu0 0.0
        %843 = vmatprep.subr.mxu0 0.0
        %844 = vmatpush1.msra.mxu0 0.0
        %845 = vmatprep.subr.mxu0 0.0
        %846 = vmatpush1.msra.mxu0 0.0
        %847 = vmatprep.subr.mxu0 0.0
        %848 = vmatpush1.msra.mxu0 0.0
        %849 = vmatprep.subr.mxu0 0.0
        %850 = vmatpush1.msra.mxu0 0.0
        %851 = vmatprep.subr.mxu0 0.0
        %852 = vmatpush1.msra.mxu0 0.0
        %853 = vmatprep.subr.mxu0 0.0
        %854 = vmatpush1.msra.mxu0 0.0
        %855 = vmatprep.subr.mxu0 0.0
        %856 = vmatpush1.msra.mxu0 0.0
        %857 = vmatprep.subr.mxu0 0.0
        %858 = vmatpush1.msra.mxu0 0.0
        %859 = vmatprep.subr.mxu0 0.0
        %860 = vmatpush1.msra.mxu0 0.0
        %861 = vmatprep.subr.mxu0 0.0
        %862 = vmatpush1.msra.mxu0 0.0
        %863 = vmatprep.subr.mxu0 0.0
        %864 = vmatpush1.msra.mxu0 0.0
        %865 = vmatprep.subr.mxu0 0.0
        %866 = vmatpush1.msra.mxu0 0.0
        %867 = vmatprep.subr.mxu0 0.0
        %868 = vmatpush1.msra.mxu0 0.0
        %869 = vmatprep.subr.mxu0 0.0
        %870 = vmatpush1.msra.mxu0 0.0
        %871 = vmatprep.subr.mxu0 0.0
        %872 = vmatpush1.msra.mxu0 0.0
        %873 = vmatprep.subr.mxu0 0.0
        %874 = vmatpush1.msra.mxu0 0.0
        %875 = vmatprep.subr.mxu0 0.0
        %876 = vmatpush1.msra.mxu0 0.0
        %877 = vmatprep.subr.mxu0 0.0
        %878 = vmatpush1.msra.mxu0 0.0
        %879 = vmatprep.subr.mxu0 0.0
        %880 = vmatpush1.msra.mxu0 0.0
        %881 = vmatprep.subr.mxu0 0.0
        %882 = vmatpush1.msra.mxu0 0.0
        %883 = vmatprep.subr.mxu0 0.0
        %884 = vmatpush1.msra.mxu0 0.0
        %885 = vmatprep.subr.mxu0 0.0
        %886 = vmatpush1.msra.mxu0 0.0
        %887 = vmatprep.subr.mxu0 0.0
        %888 = vmatpush1.msra.mxu0 0.0
        %889 = vmatprep.subr.mxu0 0.0
        %890 = vmatpush1.msra.mxu0 0.0
        %891 = vmatprep.subr.mxu0 0.0
        %892 = vmatpush1.msra.mxu0 0.0
        %893 = vmatprep.subr.mxu0 0.0
        %894 = vmatpush1.msra.mxu0 0.0
        %895 = vmatprep.subr.mxu0 0.0
        %896 = vmatpush1.msra.mxu0 0.0
        %897 = vmatprep.subr.mxu0 0.0
        %898 = vmatpush1.msra.mxu0 0.0
        %899 = vmatprep.mubr.f32.mxu0 0.0
        %900 = vmatmul.mubr.f32.gmra.mrb[0].mxu0 %v833
        %v901 = vpop.f32.mrb[0].mxu0
        %v902 = vadd.f32 0.0, %v901
        %v903 = vpop.f32.mrb[0].mxu0
        %904 = vdwg.mxu0
        %905 = vrot.lane.b32.xlu0 %v564, 120
        %v906 = vpop.permute.xlu0 %905
        %907 = vrot.lane.b32.xlu0 %v564, 88
        %v908 = vpop.permute.xlu0 %907
        %v909 = vsel %vm575, %v906, 0
        %v911 = vsel %vm575, %v908, 0
        %913 = vmatprep.subr.mxu0 0.0
        %914 = vmatpush1.xpose.msra.mxu0 %v911
        %915 = vmatprep.subr.mxu0 0.0
        %916 = vmatpush1.xpose.msra.mxu0 0.0
        %917 = vmatprep.subr.mxu0 0.0
        %918 = vmatpush1.xpose.msra.mxu0 0.0
        %919 = vmatprep.subr.mxu0 0.0
        %920 = vmatpush1.xpose.msra.mxu0 0.0
        %921 = vmatprep.subr.mxu0 0.0
        %922 = vmatpush1.xpose.msra.mxu0 0.0
        %923 = vmatprep.subr.mxu0 0.0
        %924 = vmatpush1.xpose.msra.mxu0 0.0
        %925 = vmatprep.subr.mxu0 0.0
        %926 = vmatpush1.xpose.msra.mxu0 0.0
        %927 = vmatprep.subr.mxu0 0.0
        %928 = vmatpush1.xpose.msra.mxu0 0.0
        %929 = vmatprep.subr.mxu0 0.0
        %930 = vmatpush1.xpose.msra.mxu0 0.0
        %931 = vmatprep.subr.mxu0 0.0
        %932 = vmatpush1.xpose.msra.mxu0 0.0
        %933 = vmatprep.subr.mxu0 0.0
        %934 = vmatpush1.xpose.msra.mxu0 0.0
        %935 = vmatprep.subr.mxu0 0.0
        %936 = vmatpush1.xpose.msra.mxu0 0.0
        %937 = vmatprep.subr.mxu0 0.0
        %938 = vmatpush1.xpose.msra.mxu0 0.0
        %939 = vmatprep.subr.mxu0 0.0
        %940 = vmatpush1.xpose.msra.mxu0 0.0
        %941 = vmatprep.subr.mxu0 0.0
        %942 = vmatpush1.xpose.msra.mxu0 0.0
        %943 = vmatprep.subr.mxu0 0.0
        %944 = vmatpush1.xpose.msra.mxu0 0.0
        %945 = vmatprep.subr.mxu0 0.0
        %946 = vmatpush1.xpose.msra.mxu0 0.0
        %947 = vmatprep.subr.mxu0 0.0
        %948 = vmatpush1.xpose.msra.mxu0 0.0
        %949 = vmatprep.subr.mxu0 0.0
        %950 = vmatpush1.xpose.msra.mxu0 0.0
        %951 = vmatprep.subr.mxu0 0.0
        %952 = vmatpush1.xpose.msra.mxu0 0.0
        %953 = vmatprep.subr.mxu0 0.0
        %954 = vmatpush1.xpose.msra.mxu0 0.0
        %955 = vmatprep.subr.mxu0 0.0
        %956 = vmatpush1.xpose.msra.mxu0 0.0
        %957 = vmatprep.subr.mxu0 0.0
        %958 = vmatpush1.xpose.msra.mxu0 0.0
        %959 = vmatprep.subr.mxu0 0.0
        %960 = vmatpush1.xpose.msra.mxu0 0.0
        %961 = vmatprep.subr.mxu0 0.0
        %962 = vmatpush1.xpose.msra.mxu0 0.0
        %963 = vmatprep.subr.mxu0 0.0
        %964 = vmatpush1.xpose.msra.mxu0 0.0
        %965 = vmatprep.subr.mxu0 0.0
        %966 = vmatpush1.xpose.msra.mxu0 0.0
        %967 = vmatprep.subr.mxu0 0.0
        %968 = vmatpush1.xpose.msra.mxu0 0.0
        %969 = vmatprep.subr.mxu0 0.0
        %970 = vmatpush1.xpose.msra.mxu0 0.0
        %971 = vmatprep.subr.mxu0 0.0
        %972 = vmatpush1.xpose.msra.mxu0 0.0
        %973 = vmatprep.subr.mxu0 0.0
        %974 = vmatpush1.xpose.msra.mxu0 0.0
        %975 = vmatprep.subr.mxu0 0.0
        %976 = vmatpush1.xpose.msra.mxu0 0.0
        %977 = vmatprep.mubr.f32.mxu0 0.0
        %978 = vmatmul.mubr.f32.gmra.mrb[0].mxu0 %v909
        %v979 = vpop.f32.mrb[0].mxu0
        %v980 = vadd.f32 0.0, %v979
        %v981 = vpop.f32.mrb[0].mxu0
        %982 = vdwg.mxu0
        %983 = vrot.lane.b32.xlu0 %v569, 120
        %v984 = vpop.permute.xlu0 %983
        %985 = vrot.lane.b32.xlu0 %v569, 88
        %v986 = vpop.permute.xlu0 %985
        %v987 = vsel %vm575, %v984, 0
        %v989 = vsel %vm575, %v986, 0
        %991 = vmatprep.subr.mxu0 0.0
        %992 = vmatpush1.xpose.msra.mxu0 %v989
        %993 = vmatprep.subr.mxu0 0.0
        %994 = vmatpush1.xpose.msra.mxu0 0.0
        %995 = vmatprep.subr.mxu0 0.0
        %996 = vmatpush1.xpose.msra.mxu0 0.0
        %997 = vmatprep.subr.mxu0 0.0
        %998 = vmatpush1.xpose.msra.mxu0 0.0
        %999 = vmatprep.subr.mxu0 0.0
        %1000 = vmatpush1.xpose.msra.mxu0 0.0
        %1001 = vmatprep.subr.mxu0 0.0
        %1002 = vmatpush1.xpose.msra.mxu0 0.0
        %1003 = vmatprep.subr.mxu0 0.0
        %1004 = vmatpush1.xpose.msra.mxu0 0.0
        %1005 = vmatprep.subr.mxu0 0.0
        %1006 = vmatpush1.xpose.msra.mxu0 0.0
        %1007 = vmatprep.subr.mxu0 0.0
        %1008 = vmatpush1.xpose.msra.mxu0 0.0
        %1009 = vmatprep.subr.mxu0 0.0
        %1010 = vmatpush1.xpose.msra.mxu0 0.0
        %1011 = vmatprep.subr.mxu0 0.0
        %1012 = vmatpush1.xpose.msra.mxu0 0.0
        %1013 = vmatprep.subr.mxu0 0.0
        %1014 = vmatpush1.xpose.msra.mxu0 0.0
        %1015 = vmatprep.subr.mxu0 0.0
        %1016 = vmatpush1.xpose.msra.mxu0 0.0
        %1017 = vmatprep.subr.mxu0 0.0
        %1018 = vmatpush1.xpose.msra.mxu0 0.0
        %1019 = vmatprep.subr.mxu0 0.0
        %1020 = vmatpush1.xpose.msra.mxu0 0.0
        %1021 = vmatprep.subr.mxu0 0.0
        %1022 = vmatpush1.xpose.msra.mxu0 0.0
        %1023 = vmatprep.subr.mxu0 0.0
        %1024 = vmatpush1.xpose.msra.mxu0 0.0
        %1025 = vmatprep.subr.mxu0 0.0
        %1026 = vmatpush1.xpose.msra.mxu0 0.0
        %1027 = vmatprep.subr.mxu0 0.0
        %1028 = vmatpush1.xpose.msra.mxu0 0.0
        %1029 = vmatprep.subr.mxu0 0.0
        %1030 = vmatpush1.xpose.msra.mxu0 0.0
        %1031 = vmatprep.subr.mxu0 0.0
        %1032 = vmatpush1.xpose.msra.mxu0 0.0
        %1033 = vmatprep.subr.mxu0 0.0
        %1034 = vmatpush1.xpose.msra.mxu0 0.0
        %1035 = vmatprep.subr.mxu0 0.0
        %1036 = vmatpush1.xpose.msra.mxu0 0.0
        %1037 = vmatprep.subr.mxu0 0.0
        %1038 = vmatpush1.xpose.msra.mxu0 0.0
        %1039 = vmatprep.subr.mxu0 0.0
        %1040 = vmatpush1.xpose.msra.mxu0 0.0
        %1041 = vmatprep.subr.mxu0 0.0
        %1042 = vmatpush1.xpose.msra.mxu0 0.0
        %1043 = vmatprep.subr.mxu0 0.0
        %1044 = vmatpush1.xpose.msra.mxu0 0.0
        %1045 = vmatprep.subr.mxu0 0.0
        %1046 = vmatpush1.xpose.msra.mxu0 0.0
        %1047 = vmatprep.subr.mxu0 0.0
        %1048 = vmatpush1.xpose.msra.mxu0 0.0
        %1049 = vmatprep.subr.mxu0 0.0
        %1050 = vmatpush1.xpose.msra.mxu0 0.0
        %1051 = vmatprep.subr.mxu0 0.0
        %1052 = vmatpush1.xpose.msra.mxu0 0.0
        %1053 = vmatprep.subr.mxu0 0.0
        %1054 = vmatpush1.xpose.msra.mxu0 0.0
        %1055 = vmatprep.mubr.f32.mxu0 0.0
        %1056 = vmatmul.mubr.f32.gmra.mrb[0].mxu0 %v987
        %v1057 = vpop.f32.mrb[0].mxu0
        %v1058 = vadd.f32 0.0, %v1057
        %v1059 = vpop.f32.mrb[0].mxu0
        %1060 = vdwg.mxu0
        %v1061 = vmul.f32 %v980, 0.35355338
        %v1062 = vmul.f32 %v1058, 0.35355338
        %v1063 = vadd.f32 %v1061, %v476
        %v1064 = vadd.f32 %v1062, %v477
        %v1065 = vsel %vm575, %v1063, -inf
        %1066 = vmax.xlane.f32.xlu0 %v1065
        %v1067 = vpop.xlane.xlu0 %1066
        %v1068 = vsel %vm575, %v1064, -inf
        %1069 = vmax.xlane.f32.xlu0 %v1068
        %v1070 = vpop.xlane.xlu0 %1069
        %v1071 = vsub.f32 %v1063, %v1067
        %v1072 = vsub.f32 %v1064, %v1070
        %v1073 = vmul.f32 %v1071, 1.442695
        %v1074 = vpow.pop %v1073
        %v1075 = vmul.f32 %v1072, 1.442695
        %v1076 = vpow.pop %v1075
        %v1077 = vsel %vm575, %v1074, 0.0
        %1078 = vadd.xlane.f32.xlu0 %v1077
        %v1079 = vpop.xlane.xlu0 %1078
        %v1080 = vsel %vm575, %v1076, 0.0
        %1081 = vadd.xlane.f32.xlu0 %v1080
        %v1082 = vpop.xlane.xlu0 %1081
        %v1083 = vrcp.pop %v1079
        %v1084 = vrcp.pop %v1082
        %v1085 = vmul.f32 %v1074, %v1083
        %v1086 = vmul.f32 %v1076, %v1084
        %1087 = vrot.lane.b32.xlu0 %v564, 56
        %v1088 = vpop.permute.xlu0 %1087
        %v1091 = vsel %vm575, %v1085, 0
        %1093 = vmatprep.subr.mxu0 0.0
        %1094 = vmatpush1.msra.mxu0 %v1088
        %1095 = vmatprep.subr.mxu0 0.0
        %1096 = vmatpush1.msra.mxu0 0.0
        %1097 = vmatprep.subr.mxu0 0.0
        %1098 = vmatpush1.msra.mxu0 0.0
        %1099 = vmatprep.subr.mxu0 0.0
        %1100 = vmatpush1.msra.mxu0 0.0
        %1101 = vmatprep.subr.mxu0 0.0
        %1102 = vmatpush1.msra.mxu0 0.0
        %1103 = vmatprep.subr.mxu0 0.0
        %1104 = vmatpush1.msra.mxu0 0.0
        %1105 = vmatprep.subr.mxu0 0.0
        %1106 = vmatpush1.msra.mxu0 0.0
        %1107 = vmatprep.subr.mxu0 0.0
        %1108 = vmatpush1.msra.mxu0 0.0
        %1109 = vmatprep.subr.mxu0 0.0
        %1110 = vmatpush1.msra.mxu0 0.0
        %1111 = vmatprep.subr.mxu0 0.0
        %1112 = vmatpush1.msra.mxu0 0.0
        %1113 = vmatprep.subr.mxu0 0.0
        %1114 = vmatpush1.msra.mxu0 0.0
        %1115 = vmatprep.subr.mxu0 0.0
        %1116 = vmatpush1.msra.mxu0 0.0
        %1117 = vmatprep.subr.mxu0 0.0
        %1118 = vmatpush1.msra.mxu0 0.0
        %1119 = vmatprep.subr.mxu0 0.0
        %1120 = vmatpush1.msra.mxu0 0.0
        %1121 = vmatprep.subr.mxu0 0.0
        %1122 = vmatpush1.msra.mxu0 0.0
        %1123 = vmatprep.subr.mxu0 0.0
        %1124 = vmatpush1.msra.mxu0 0.0
        %1125 = vmatprep.subr.mxu0 0.0
        %1126 = vmatpush1.msra.mxu0 0.0
        %1127 = vmatprep.subr.mxu0 0.0
        %1128 = vmatpush1.msra.mxu0 0.0
        %1129 = vmatprep.subr.mxu0 0.0
        %1130 = vmatpush1.msra.mxu0 0.0
        %1131 = vmatprep.subr.mxu0 0.0
        %1132 = vmatpush1.msra.mxu0 0.0
        %1133 = vmatprep.subr.mxu0 0.0
        %1134 = vmatpush1.msra.mxu0 0.0
        %1135 = vmatprep.subr.mxu0 0.0
        %1136 = vmatpush1.msra.mxu0 0.0
        %1137 = vmatprep.subr.mxu0 0.0
        %1138 = vmatpush1.msra.mxu0 0.0
        %1139 = vmatprep.subr.mxu0 0.0
        %1140 = vmatpush1.msra.mxu0 0.0
        %1141 = vmatprep.subr.mxu0 0.0
        %1142 = vmatpush1.msra.mxu0 0.0
        %1143 = vmatprep.subr.mxu0 0.0
        %1144 = vmatpush1.msra.mxu0 0.0
        %1145 = vmatprep.subr.mxu0 0.0
        %1146 = vmatpush1.msra.mxu0 0.0
        %1147 = vmatprep.subr.mxu0 0.0
        %1148 = vmatpush1.msra.mxu0 0.0
        %1149 = vmatprep.subr.mxu0 0.0
        %1150 = vmatpush1.msra.mxu0 0.0
        %1151 = vmatprep.subr.mxu0 0.0
        %1152 = vmatpush1.msra.mxu0 0.0
        %1153 = vmatprep.subr.mxu0 0.0
        %1154 = vmatpush1.msra.mxu0 0.0
        %1155 = vmatprep.subr.mxu0 0.0
        %1156 = vmatpush1.msra.mxu0 0.0
        %1157 = vmatprep.mubr.f32.mxu0 0.0
        %1158 = vmatmul.mubr.f32.gmra.mrb[0].mxu0 %v1091
        %v1159 = vpop.f32.mrb[0].mxu0
        %v1160 = vadd.f32 0.0, %v1159
        %v1161 = vpop.f32.mrb[0].mxu0
        %1162 = vdwg.mxu0
        %1163 = vrot.lane.b32.xlu0 %v569, 56
        %v1164 = vpop.permute.xlu0 %1163
        %v1167 = vsel %vm575, %v1086, 0
        %1169 = vmatprep.subr.mxu0 0.0
        %1170 = vmatpush1.msra.mxu0 %v1164
        %1171 = vmatprep.subr.mxu0 0.0
        %1172 = vmatpush1.msra.mxu0 0.0
        %1173 = vmatprep.subr.mxu0 0.0
        %1174 = vmatpush1.msra.mxu0 0.0
        %1175 = vmatprep.subr.mxu0 0.0
        %1176 = vmatpush1.msra.mxu0 0.0
        %1177 = vmatprep.subr.mxu0 0.0
        %1178 = vmatpush1.msra.mxu0 0.0
        %1179 = vmatprep.subr.mxu0 0.0
        %1180 = vmatpush1.msra.mxu0 0.0
        %1181 = vmatprep.subr.mxu0 0.0
        %1182 = vmatpush1.msra.mxu0 0.0
        %1183 = vmatprep.subr.mxu0 0.0
        %1184 = vmatpush1.msra.mxu0 0.0
        %1185 = vmatprep.subr.mxu0 0.0
        %1186 = vmatpush1.msra.mxu0 0.0
        %1187 = vmatprep.subr.mxu0 0.0
        %1188 = vmatpush1.msra.mxu0 0.0
        %1189 = vmatprep.subr.mxu0 0.0
        %1190 = vmatpush1.msra.mxu0 0.0
        %1191 = vmatprep.subr.mxu0 0.0
        %1192 = vmatpush1.msra.mxu0 0.0
        %1193 = vmatprep.subr.mxu0 0.0
        %1194 = vmatpush1.msra.mxu0 0.0
        %1195 = vmatprep.subr.mxu0 0.0
        %1196 = vmatpush1.msra.mxu0 0.0
        %1197 = vmatprep.subr.mxu0 0.0
        %1198 = vmatpush1.msra.mxu0 0.0
        %1199 = vmatprep.subr.mxu0 0.0
        %1200 = vmatpush1.msra.mxu0 0.0
        %1201 = vmatprep.subr.mxu0 0.0
        %1202 = vmatpush1.msra.mxu0 0.0
        %1203 = vmatprep.subr.mxu0 0.0
        %1204 = vmatpush1.msra.mxu0 0.0
        %1205 = vmatprep.subr.mxu0 0.0
        %1206 = vmatpush1.msra.mxu0 0.0
        %1207 = vmatprep.subr.mxu0 0.0
        %1208 = vmatpush1.msra.mxu0 0.0
        %1209 = vmatprep.subr.mxu0 0.0
        %1210 = vmatpush1.msra.mxu0 0.0
        %1211 = vmatprep.subr.mxu0 0.0
        %1212 = vmatpush1.msra.mxu0 0.0
        %1213 = vmatprep.subr.mxu0 0.0
        %1214 = vmatpush1.msra.mxu0 0.0
        %1215 = vmatprep.subr.mxu0 0.0
        %1216 = vmatpush1.msra.mxu0 0.0
        %1217 = vmatprep.subr.mxu0 0.0
        %1218 = vmatpush1.msra.mxu0 0.0
        %1219 = vmatprep.subr.mxu0 0.0
        %1220 = vmatpush1.msra.mxu0 0.0
        %1221 = vmatprep.subr.mxu0 0.0
        %1222 = vmatpush1.msra.mxu0 0.0
        %1223 = vmatprep.subr.mxu0 0.0
        %1224 = vmatpush1.msra.mxu0 0.0
        %1225 = vmatprep.subr.mxu0 0.0
        %1226 = vmatpush1.msra.mxu0 0.0
        %1227 = vmatprep.subr.mxu0 0.0
        %1228 = vmatpush1.msra.mxu0 0.0
        %1229 = vmatprep.subr.mxu0 0.0
        %1230 = vmatpush1.msra.mxu0 0.0
        %1231 = vmatprep.subr.mxu0 0.0
        %1232 = vmatpush1.msra.mxu0 0.0
        %1233 = vmatprep.mubr.f32.mxu0 0.0
        %1234 = vmatmul.mubr.f32.gmra.mrb[0].mxu0 %v1167
        %v1235 = vpop.f32.mrb[0].mxu0
        %v1236 = vadd.f32 0.0, %v1235
        %v1237 = vpop.f32.mrb[0].mxu0
        %1238 = vdwg.mxu0
        %1239 = vrot.lane.b32.xlu0 %v564, 112
        %v1240 = vpop.permute.xlu0 %1239
        %1241 = vrot.lane.b32.xlu0 %v564, 80
        %v1242 = vpop.permute.xlu0 %1241
        %v1243 = vsel %vm575, %v1240, 0
        %v1245 = vsel %vm575, %v1242, 0
        %1247 = vmatprep.subr.mxu0 0.0
        %1248 = vmatpush1.xpose.msra.mxu0 %v1245
        %1249 = vmatprep.subr.mxu0 0.0
        %1250 = vmatpush1.xpose.msra.mxu0 0.0
        %1251 = vmatprep.subr.mxu0 0.0
        %1252 = vmatpush1.xpose.msra.mxu0 0.0
        %1253 = vmatprep.subr.mxu0 0.0
        %1254 = vmatpush1.xpose.msra.mxu0 0.0
        %1255 = vmatprep.subr.mxu0 0.0
        %1256 = vmatpush1.xpose.msra.mxu0 0.0
        %1257 = vmatprep.subr.mxu0 0.0
        %1258 = vmatpush1.xpose.msra.mxu0 0.0
        %1259 = vmatprep.subr.mxu0 0.0
        %1260 = vmatpush1.xpose.msra.mxu0 0.0
        %1261 = vmatprep.subr.mxu0 0.0
        %1262 = vmatpush1.xpose.msra.mxu0 0.0
        %1263 = vmatprep.subr.mxu0 0.0
        %1264 = vmatpush1.xpose.msra.mxu0 0.0
        %1265 = vmatprep.subr.mxu0 0.0
        %1266 = vmatpush1.xpose.msra.mxu0 0.0
        %1267 = vmatprep.subr.mxu0 0.0
        %1268 = vmatpush1.xpose.msra.mxu0 0.0
        %1269 = vmatprep.subr.mxu0 0.0
        %1270 = vmatpush1.xpose.msra.mxu0 0.0
        %1271 = vmatprep.subr.mxu0 0.0
        %1272 = vmatpush1.xpose.msra.mxu0 0.0
        %1273 = vmatprep.subr.mxu0 0.0
        %1274 = vmatpush1.xpose.msra.mxu0 0.0
        %1275 = vmatprep.subr.mxu0 0.0
        %1276 = vmatpush1.xpose.msra.mxu0 0.0
        %1277 = vmatprep.subr.mxu0 0.0
        %1278 = vmatpush1.xpose.msra.mxu0 0.0
        %1279 = vmatprep.subr.mxu0 0.0
        %1280 = vmatpush1.xpose.msra.mxu0 0.0
        %1281 = vmatprep.subr.mxu0 0.0
        %1282 = vmatpush1.xpose.msra.mxu0 0.0
        %1283 = vmatprep.subr.mxu0 0.0
        %1284 = vmatpush1.xpose.msra.mxu0 0.0
        %1285 = vmatprep.subr.mxu0 0.0
        %1286 = vmatpush1.xpose.msra.mxu0 0.0
        %1287 = vmatprep.subr.mxu0 0.0
        %1288 = vmatpush1.xpose.msra.mxu0 0.0
        %1289 = vmatprep.subr.mxu0 0.0
        %1290 = vmatpush1.xpose.msra.mxu0 0.0
        %1291 = vmatprep.subr.mxu0 0.0
        %1292 = vmatpush1.xpose.msra.mxu0 0.0
        %1293 = vmatprep.subr.mxu0 0.0
        %1294 = vmatpush1.xpose.msra.mxu0 0.0
        %1295 = vmatprep.subr.mxu0 0.0
        %1296 = vmatpush1.xpose.msra.mxu0 0.0
        %1297 = vmatprep.subr.mxu0 0.0
        %1298 = vmatpush1.xpose.msra.mxu0 0.0
        %1299 = vmatprep.subr.mxu0 0.0
        %1300 = vmatpush1.xpose.msra.mxu0 0.0
        %1301 = vmatprep.subr.mxu0 0.0
        %1302 = vmatpush1.xpose.msra.mxu0 0.0
        %1303 = vmatprep.subr.mxu0 0.0
        %1304 = vmatpush1.xpose.msra.mxu0 0.0
        %1305 = vmatprep.subr.mxu0 0.0
        %1306 = vmatpush1.xpose.msra.mxu0 0.0
        %1307 = vmatprep.subr.mxu0 0.0
        %1308 = vmatpush1.xpose.msra.mxu0 0.0
        %1309 = vmatprep.subr.mxu0 0.0
        %1310 = vmatpush1.xpose.msra.mxu0 0.0
        %1311 = vmatprep.mubr.f32.mxu0 0.0
        %1312 = vmatmul.mubr.f32.gmra.mrb[0].mxu0 %v1243
        %v1313 = vpop.f32.mrb[0].mxu0
        %v1314 = vadd.f32 0.0, %v1313
        %v1315 = vpop.f32.mrb[0].mxu0
        %1316 = vdwg.mxu0
        %1317 = vrot.lane.b32.xlu0 %v569, 112
        %v1318 = vpop.permute.xlu0 %1317
        %1319 = vrot.lane.b32.xlu0 %v569, 80
        %v1320 = vpop.permute.xlu0 %1319
        %v1321 = vsel %vm575, %v1318, 0
        %v1323 = vsel %vm575, %v1320, 0
        %1325 = vmatprep.subr.mxu0 0.0
        %1326 = vmatpush1.xpose.msra.mxu0 %v1323
        %1327 = vmatprep.subr.mxu0 0.0
        %1328 = vmatpush1.xpose.msra.mxu0 0.0
        %1329 = vmatprep.subr.mxu0 0.0
        %1330 = vmatpush1.xpose.msra.mxu0 0.0
        %1331 = vmatprep.subr.mxu0 0.0
        %1332 = vmatpush1.xpose.msra.mxu0 0.0
        %1333 = vmatprep.subr.mxu0 0.0
        %1334 = vmatpush1.xpose.msra.mxu0 0.0
        %1335 = vmatprep.subr.mxu0 0.0
        %1336 = vmatpush1.xpose.msra.mxu0 0.0
        %1337 = vmatprep.subr.mxu0 0.0
        %1338 = vmatpush1.xpose.msra.mxu0 0.0
        %1339 = vmatprep.subr.mxu0 0.0
        %1340 = vmatpush1.xpose.msra.mxu0 0.0
        %1341 = vmatprep.subr.mxu0 0.0
        %1342 = vmatpush1.xpose.msra.mxu0 0.0
        %1343 = vmatprep.subr.mxu0 0.0
        %1344 = vmatpush1.xpose.msra.mxu0 0.0
        %1345 = vmatprep.subr.mxu0 0.0
        %1346 = vmatpush1.xpose.msra.mxu0 0.0
        %1347 = vmatprep.subr.mxu0 0.0
        %1348 = vmatpush1.xpose.msra.mxu0 0.0
        %1349 = vmatprep.subr.mxu0 0.0
        %1350 = vmatpush1.xpose.msra.mxu0 0.0
        %1351 = vmatprep.subr.mxu0 0.0
        %1352 = vmatpush1.xpose.msra.mxu0 0.0
        %1353 = vmatprep.subr.mxu0 0.0
        %1354 = vmatpush1.xpose.msra.mxu0 0.0
        %1355 = vmatprep.subr.mxu0 0.0
        %1356 = vmatpush1.xpose.msra.mxu0 0.0
        %1357 = vmatprep.subr.mxu0 0.0
        %1358 = vmatpush1.xpose.msra.mxu0 0.0
        %1359 = vmatprep.subr.mxu0 0.0
        %1360 = vmatpush1.xpose.msra.mxu0 0.0
        %1361 = vmatprep.subr.mxu0 0.0
        %1362 = vmatpush1.xpose.msra.mxu0 0.0
        %1363 = vmatprep.subr.mxu0 0.0
        %1364 = vmatpush1.xpose.msra.mxu0 0.0
        %1365 = vmatprep.subr.mxu0 0.0
        %1366 = vmatpush1.xpose.msra.mxu0 0.0
        %1367 = vmatprep.subr.mxu0 0.0
        %1368 = vmatpush1.xpose.msra.mxu0 0.0
        %1369 = vmatprep.subr.mxu0 0.0
        %1370 = vmatpush1.xpose.msra.mxu0 0.0
        %1371 = vmatprep.subr.mxu0 0.0
        %1372 = vmatpush1.xpose.msra.mxu0 0.0
        %1373 = vmatprep.subr.mxu0 0.0
        %1374 = vmatpush1.xpose.msra.mxu0 0.0
        %1375 = vmatprep.subr.mxu0 0.0
        %1376 = vmatpush1.xpose.msra.mxu0 0.0
        %1377 = vmatprep.subr.mxu0 0.0
        %1378 = vmatpush1.xpose.msra.mxu0 0.0
        %1379 = vmatprep.subr.mxu0 0.0
        %1380 = vmatpush1.xpose.msra.mxu0 0.0
        %1381 = vmatprep.subr.mxu0 0.0
        %1382 = vmatpush1.xpose.msra.mxu0 0.0
        %1383 = vmatprep.subr.mxu0 0.0
        %1384 = vmatpush1.xpose.msra.mxu0 0.0
        %1385 = vmatprep.subr.mxu0 0.0
        %1386 = vmatpush1.xpose.msra.mxu0 0.0
        %1387 = vmatprep.subr.mxu0 0.0
        %1388 = vmatpush1.xpose.msra.mxu0 0.0
        %1389 = vmatprep.mubr.f32.mxu0 0.0
        %1390 = vmatmul.mubr.f32.gmra.mrb[0].mxu0 %v1321
        %v1391 = vpop.f32.mrb[0].mxu0
        %v1392 = vadd.f32 0.0, %v1391
        %v1393 = vpop.f32.mrb[0].mxu0
        %1394 = vdwg.mxu0
        %v1395 = vmul.f32 %v1314, 0.35355338
        %v1396 = vmul.f32 %v1392, 0.35355338
        %v1397 = vadd.f32 %v1395, %v476
        %v1398 = vadd.f32 %v1396, %v477
        %v1399 = vsel %vm575, %v1397, -inf
        %1400 = vmax.xlane.f32.xlu0 %v1399
        %v1401 = vpop.xlane.xlu0 %1400
        %v1402 = vsel %vm575, %v1398, -inf
        %1403 = vmax.xlane.f32.xlu0 %v1402
        %v1404 = vpop.xlane.xlu0 %1403
        %v1405 = vsub.f32 %v1397, %v1401
        %v1406 = vsub.f32 %v1398, %v1404
        %v1407 = vmul.f32 %v1405, 1.442695
        %v1408 = vpow.pop %v1407
        %v1409 = vmul.f32 %v1406, 1.442695
        %v1410 = vpow.pop %v1409
        %v1411 = vsel %vm575, %v1408, 0.0
        %1412 = vadd.xlane.f32.xlu0 %v1411
        %v1413 = vpop.xlane.xlu0 %1412
        %v1414 = vsel %vm575, %v1410, 0.0
        %1415 = vadd.xlane.f32.xlu0 %v1414
        %v1416 = vpop.xlane.xlu0 %1415
        %v1417 = vrcp.pop %v1413
        %v1418 = vrcp.pop %v1416
        %v1419 = vmul.f32 %v1408, %v1417
        %v1420 = vmul.f32 %v1410, %v1418
        %1421 = vrot.lane.b32.xlu0 %v564, 48
        %v1422 = vpop.permute.xlu0 %1421
        %v1425 = vsel %vm575, %v1419, 0
        %1427 = vmatprep.subr.mxu0 0.0
        %1428 = vmatpush1.msra.mxu0 %v1422
        %1429 = vmatprep.subr.mxu0 0.0
        %1430 = vmatpush1.msra.mxu0 0.0
        %1431 = vmatprep.subr.mxu0 0.0
        %1432 = vmatpush1.msra.mxu0 0.0
        %1433 = vmatprep.subr.mxu0 0.0
        %1434 = vmatpush1.msra.mxu0 0.0
        %1435 = vmatprep.subr.mxu0 0.0
        %1436 = vmatpush1.msra.mxu0 0.0
        %1437 = vmatprep.subr.mxu0 0.0
        %1438 = vmatpush1.msra.mxu0 0.0
        %1439 = vmatprep.subr.mxu0 0.0
        %1440 = vmatpush1.msra.mxu0 0.0
        %1441 = vmatprep.subr.mxu0 0.0
        %1442 = vmatpush1.msra.mxu0 0.0
        %1443 = vmatprep.subr.mxu0 0.0
        %1444 = vmatpush1.msra.mxu0 0.0
        %1445 = vmatprep.subr.mxu0 0.0
        %1446 = vmatpush1.msra.mxu0 0.0
        %1447 = vmatprep.subr.mxu0 0.0
        %1448 = vmatpush1.msra.mxu0 0.0
        %1449 = vmatprep.subr.mxu0 0.0
        %1450 = vmatpush1.msra.mxu0 0.0
        %1451 = vmatprep.subr.mxu0 0.0
        %1452 = vmatpush1.msra.mxu0 0.0
        %1453 = vmatprep.subr.mxu0 0.0
        %1454 = vmatpush1.msra.mxu0 0.0
        %1455 = vmatprep.subr.mxu0 0.0
        %1456 = vmatpush1.msra.mxu0 0.0
        %1457 = vmatprep.subr.mxu0 0.0
        %1458 = vmatpush1.msra.mxu0 0.0
        %1459 = vmatprep.subr.mxu0 0.0
        %1460 = vmatpush1.msra.mxu0 0.0
        %1461 = vmatprep.subr.mxu0 0.0
        %1462 = vmatpush1.msra.mxu0 0.0
        %1463 = vmatprep.subr.mxu0 0.0
        %1464 = vmatpush1.msra.mxu0 0.0
        %1465 = vmatprep.subr.mxu0 0.0
        %1466 = vmatpush1.msra.mxu0 0.0
        %1467 = vmatprep.subr.mxu0 0.0
        %1468 = vmatpush1.msra.mxu0 0.0
        %1469 = vmatprep.subr.mxu0 0.0
        %1470 = vmatpush1.msra.mxu0 0.0
        %1471 = vmatprep.subr.mxu0 0.0
        %1472 = vmatpush1.msra.mxu0 0.0
        %1473 = vmatprep.subr.mxu0 0.0
        %1474 = vmatpush1.msra.mxu0 0.0
        %1475 = vmatprep.subr.mxu0 0.0
        %1476 = vmatpush1.msra.mxu0 0.0
        %1477 = vmatprep.subr.mxu0 0.0
        %1478 = vmatpush1.msra.mxu0 0.0
        %1479 = vmatprep.subr.mxu0 0.0
        %1480 = vmatpush1.msra.mxu0 0.0
        %1481 = vmatprep.subr.mxu0 0.0
        %1482 = vmatpush1.msra.mxu0 0.0
        %1483 = vmatprep.subr.mxu0 0.0
        %1484 = vmatpush1.msra.mxu0 0.0
        %1485 = vmatprep.subr.mxu0 0.0
        %1486 = vmatpush1.msra.mxu0 0.0
        %1487 = vmatprep.subr.mxu0 0.0
        %1488 = vmatpush1.msra.mxu0 0.0
        %1489 = vmatprep.subr.mxu0 0.0
        %1490 = vmatpush1.msra.mxu0 0.0
        %1491 = vmatprep.mubr.f32.mxu0 0.0
        %1492 = vmatmul.mubr.f32.gmra.mrb[0].mxu0 %v1425
        %v1493 = vpop.f32.mrb[0].mxu0
        %v1494 = vadd.f32 0.0, %v1493
        %v1495 = vpop.f32.mrb[0].mxu0
        %1496 = vdwg.mxu0
        %1497 = vrot.lane.b32.xlu0 %v569, 48
        %v1498 = vpop.permute.xlu0 %1497
        %v1501 = vsel %vm575, %v1420, 0
        %1503 = vmatprep.subr.mxu0 0.0
        %1504 = vmatpush1.msra.mxu0 %v1498
        %1505 = vmatprep.subr.mxu0 0.0
        %1506 = vmatpush1.msra.mxu0 0.0
        %1507 = vmatprep.subr.mxu0 0.0
        %1508 = vmatpush1.msra.mxu0 0.0
        %1509 = vmatprep.subr.mxu0 0.0
        %1510 = vmatpush1.msra.mxu0 0.0
        %1511 = vmatprep.subr.mxu0 0.0
        %1512 = vmatpush1.msra.mxu0 0.0
        %1513 = vmatprep.subr.mxu0 0.0
        %1514 = vmatpush1.msra.mxu0 0.0
        %1515 = vmatprep.subr.mxu0 0.0
        %1516 = vmatpush1.msra.mxu0 0.0
        %1517 = vmatprep.subr.mxu0 0.0
        %1518 = vmatpush1.msra.mxu0 0.0
        %1519 = vmatprep.subr.mxu0 0.0
        %1520 = vmatpush1.msra.mxu0 0.0
        %1521 = vmatprep.subr.mxu0 0.0
        %1522 = vmatpush1.msra.mxu0 0.0
        %1523 = vmatprep.subr.mxu0 0.0
        %1524 = vmatpush1.msra.mxu0 0.0
        %1525 = vmatprep.subr.mxu0 0.0
        %1526 = vmatpush1.msra.mxu0 0.0
        %1527 = vmatprep.subr.mxu0 0.0
        %1528 = vmatpush1.msra.mxu0 0.0
        %1529 = vmatprep.subr.mxu0 0.0
        %1530 = vmatpush1.msra.mxu0 0.0
        %1531 = vmatprep.subr.mxu0 0.0
        %1532 = vmatpush1.msra.mxu0 0.0
        %1533 = vmatprep.subr.mxu0 0.0
        %1534 = vmatpush1.msra.mxu0 0.0
        %1535 = vmatprep.subr.mxu0 0.0
        %1536 = vmatpush1.msra.mxu0 0.0
        %1537 = vmatprep.subr.mxu0 0.0
        %1538 = vmatpush1.msra.mxu0 0.0
        %1539 = vmatprep.subr.mxu0 0.0
        %1540 = vmatpush1.msra.mxu0 0.0
        %1541 = vmatprep.subr.mxu0 0.0
        %1542 = vmatpush1.msra.mxu0 0.0
        %1543 = vmatprep.subr.mxu0 0.0
        %1544 = vmatpush1.msra.mxu0 0.0
        %1545 = vmatprep.subr.mxu0 0.0
        %1546 = vmatpush1.msra.mxu0 0.0
        %1547 = vmatprep.subr.mxu0 0.0
        %1548 = vmatpush1.msra.mxu0 0.0
        %1549 = vmatprep.subr.mxu0 0.0
        %1550 = vmatpush1.msra.mxu0 0.0
        %1551 = vmatprep.subr.mxu0 0.0
        %1552 = vmatpush1.msra.mxu0 0.0
        %1553 = vmatprep.subr.mxu0 0.0
        %1554 = vmatpush1.msra.mxu0 0.0
        %1555 = vmatprep.subr.mxu0 0.0
        %1556 = vmatpush1.msra.mxu0 0.0
        %1557 = vmatprep.subr.mxu0 0.0
        %1558 = vmatpush1.msra.mxu0 0.0
        %1559 = vmatprep.subr.mxu0 0.0
        %1560 = vmatpush1.msra.mxu0 0.0
        %1561 = vmatprep.subr.mxu0 0.0
        %1562 = vmatpush1.msra.mxu0 0.0
        %1563 = vmatprep.subr.mxu0 0.0
        %1564 = vmatpush1.msra.mxu0 0.0
        %1565 = vmatprep.subr.mxu0 0.0
        %1566 = vmatpush1.msra.mxu0 0.0
        %1567 = vmatprep.mubr.f32.mxu0 0.0
        %1568 = vmatmul.mubr.f32.gmra.mrb[0].mxu0 %v1501
        %v1569 = vpop.f32.mrb[0].mxu0
        %v1570 = vadd.f32 0.0, %v1569
        %v1571 = vpop.f32.mrb[0].mxu0
        %1572 = vdwg.mxu0
        %1573 = vrot.lane.b32.xlu0 %v564, 104
        %v1574 = vpop.permute.xlu0 %1573
        %1575 = vrot.lane.b32.xlu0 %v564, 72
        %v1576 = vpop.permute.xlu0 %1575
        %v1577 = vsel %vm575, %v1574, 0
        %v1579 = vsel %vm575, %v1576, 0
        %1581 = vmatprep.subr.mxu0 0.0
        %1582 = vmatpush1.xpose.msra.mxu0 %v1579
        %1583 = vmatprep.subr.mxu0 0.0
        %1584 = vmatpush1.xpose.msra.mxu0 0.0
        %1585 = vmatprep.subr.mxu0 0.0
        %1586 = vmatpush1.xpose.msra.mxu0 0.0
        %1587 = vmatprep.subr.mxu0 0.0
        %1588 = vmatpush1.xpose.msra.mxu0 0.0
        %1589 = vmatprep.subr.mxu0 0.0
        %1590 = vmatpush1.xpose.msra.mxu0 0.0
        %1591 = vmatprep.subr.mxu0 0.0
        %1592 = vmatpush1.xpose.msra.mxu0 0.0
        %1593 = vmatprep.subr.mxu0 0.0
        %1594 = vmatpush1.xpose.msra.mxu0 0.0
        %1595 = vmatprep.subr.mxu0 0.0
        %1596 = vmatpush1.xpose.msra.mxu0 0.0
        %1597 = vmatprep.subr.mxu0 0.0
        %1598 = vmatpush1.xpose.msra.mxu0 0.0
        %1599 = vmatprep.subr.mxu0 0.0
        %1600 = vmatpush1.xpose.msra.mxu0 0.0
        %1601 = vmatprep.subr.mxu0 0.0
        %1602 = vmatpush1.xpose.msra.mxu0 0.0
        %1603 = vmatprep.subr.mxu0 0.0
        %1604 = vmatpush1.xpose.msra.mxu0 0.0
        %1605 = vmatprep.subr.mxu0 0.0
        %1606 = vmatpush1.xpose.msra.mxu0 0.0
        %1607 = vmatprep.subr.mxu0 0.0
        %1608 = vmatpush1.xpose.msra.mxu0 0.0
        %1609 = vmatprep.subr.mxu0 0.0
        %1610 = vmatpush1.xpose.msra.mxu0 0.0
        %1611 = vmatprep.subr.mxu0 0.0
        %1612 = vmatpush1.xpose.msra.mxu0 0.0
        %1613 = vmatprep.subr.mxu0 0.0
        %1614 = vmatpush1.xpose.msra.mxu0 0.0
        %1615 = vmatprep.subr.mxu0 0.0
        %1616 = vmatpush1.xpose.msra.mxu0 0.0
        %1617 = vmatprep.subr.mxu0 0.0
        %1618 = vmatpush1.xpose.msra.mxu0 0.0
        %1619 = vmatprep.subr.mxu0 0.0
        %1620 = vmatpush1.xpose.msra.mxu0 0.0
        %1621 = vmatprep.subr.mxu0 0.0
        %1622 = vmatpush1.xpose.msra.mxu0 0.0
        %1623 = vmatprep.subr.mxu0 0.0
        %1624 = vmatpush1.xpose.msra.mxu0 0.0
        %1625 = vmatprep.subr.mxu0 0.0
        %1626 = vmatpush1.xpose.msra.mxu0 0.0
        %1627 = vmatprep.subr.mxu0 0.0
        %1628 = vmatpush1.xpose.msra.mxu0 0.0
        %1629 = vmatprep.subr.mxu0 0.0
        %1630 = vmatpush1.xpose.msra.mxu0 0.0
        %1631 = vmatprep.subr.mxu0 0.0
        %1632 = vmatpush1.xpose.msra.mxu0 0.0
        %1633 = vmatprep.subr.mxu0 0.0
        %1634 = vmatpush1.xpose.msra.mxu0 0.0
        %1635 = vmatprep.subr.mxu0 0.0
        %1636 = vmatpush1.xpose.msra.mxu0 0.0
        %1637 = vmatprep.subr.mxu0 0.0
        %1638 = vmatpush1.xpose.msra.mxu0 0.0
        %1639 = vmatprep.subr.mxu0 0.0
        %1640 = vmatpush1.xpose.msra.mxu0 0.0
        %1641 = vmatprep.subr.mxu0 0.0
        %1642 = vmatpush1.xpose.msra.mxu0 0.0
        %1643 = vmatprep.subr.mxu0 0.0
        %1644 = vmatpush1.xpose.msra.mxu0 0.0
        %1645 = vmatprep.mubr.f32.mxu0 0.0
        %1646 = vmatmul.mubr.f32.gmra.mrb[0].mxu0 %v1577
        %v1647 = vpop.f32.mrb[0].mxu0
        %v1648 = vadd.f32 0.0, %v1647
        %v1649 = vpop.f32.mrb[0].mxu0
        %1650 = vdwg.mxu0
        %1651 = vrot.lane.b32.xlu0 %v569, 104
        %v1652 = vpop.permute.xlu0 %1651
        %1653 = vrot.lane.b32.xlu0 %v569, 72
        %v1654 = vpop.permute.xlu0 %1653
        %v1655 = vsel %vm575, %v1652, 0
        %v1657 = vsel %vm575, %v1654, 0
        %1659 = vmatprep.subr.mxu0 0.0
        %1660 = vmatpush1.xpose.msra.mxu0 %v1657
        %1661 = vmatprep.subr.mxu0 0.0
        %1662 = vmatpush1.xpose.msra.mxu0 0.0
        %1663 = vmatprep.subr.mxu0 0.0
        %1664 = vmatpush1.xpose.msra.mxu0 0.0
        %1665 = vmatprep.subr.mxu0 0.0
        %1666 = vmatpush1.xpose.msra.mxu0 0.0
        %1667 = vmatprep.subr.mxu0 0.0
        %1668 = vmatpush1.xpose.msra.mxu0 0.0
        %1669 = vmatprep.subr.mxu0 0.0
        %1670 = vmatpush1.xpose.msra.mxu0 0.0
        %1671 = vmatprep.subr.mxu0 0.0
        %1672 = vmatpush1.xpose.msra.mxu0 0.0
        %1673 = vmatprep.subr.mxu0 0.0
        %1674 = vmatpush1.xpose.msra.mxu0 0.0
        %1675 = vmatprep.subr.mxu0 0.0
        %1676 = vmatpush1.xpose.msra.mxu0 0.0
        %1677 = vmatprep.subr.mxu0 0.0
        %1678 = vmatpush1.xpose.msra.mxu0 0.0
        %1679 = vmatprep.subr.mxu0 0.0
        %1680 = vmatpush1.xpose.msra.mxu0 0.0
        %1681 = vmatprep.subr.mxu0 0.0
        %1682 = vmatpush1.xpose.msra.mxu0 0.0
        %1683 = vmatprep.subr.mxu0 0.0
        %1684 = vmatpush1.xpose.msra.mxu0 0.0
        %1685 = vmatprep.subr.mxu0 0.0
        %1686 = vmatpush1.xpose.msra.mxu0 0.0
        %1687 = vmatprep.subr.mxu0 0.0
        %1688 = vmatpush1.xpose.msra.mxu0 0.0
        %1689 = vmatprep.subr.mxu0 0.0
        %1690 = vmatpush1.xpose.msra.mxu0 0.0
        %1691 = vmatprep.subr.mxu0 0.0
        %1692 = vmatpush1.xpose.msra.mxu0 0.0
        %1693 = vmatprep.subr.mxu0 0.0
        %1694 = vmatpush1.xpose.msra.mxu0 0.0
        %1695 = vmatprep.subr.mxu0 0.0
        %1696 = vmatpush1.xpose.msra.mxu0 0.0
        %1697 = vmatprep.subr.mxu0 0.0
        %1698 = vmatpush1.xpose.msra.mxu0 0.0
        %1699 = vmatprep.subr.mxu0 0.0
        %1700 = vmatpush1.xpose.msra.mxu0 0.0
        %1701 = vmatprep.subr.mxu0 0.0
        %1702 = vmatpush1.xpose.msra.mxu0 0.0
        %1703 = vmatprep.subr.mxu0 0.0
        %1704 = vmatpush1.xpose.msra.mxu0 0.0
        %1705 = vmatprep.subr.mxu0 0.0
        %1706 = vmatpush1.xpose.msra.mxu0 0.0
        %1707 = vmatprep.subr.mxu0 0.0
        %1708 = vmatpush1.xpose.msra.mxu0 0.0
        %1709 = vmatprep.subr.mxu0 0.0
        %1710 = vmatpush1.xpose.msra.mxu0 0.0
        %1711 = vmatprep.subr.mxu0 0.0
        %1712 = vmatpush1.xpose.msra.mxu0 0.0
        %1713 = vmatprep.subr.mxu0 0.0
        %1714 = vmatpush1.xpose.msra.mxu0 0.0
        %1715 = vmatprep.subr.mxu0 0.0
        %1716 = vmatpush1.xpose.msra.mxu0 0.0
        %1717 = vmatprep.subr.mxu0 0.0
        %1718 = vmatpush1.xpose.msra.mxu0 0.0
        %1719 = vmatprep.subr.mxu0 0.0
        %1720 = vmatpush1.xpose.msra.mxu0 0.0
        %1721 = vmatprep.subr.mxu0 0.0
        %1722 = vmatpush1.xpose.msra.mxu0 0.0
        %1723 = vmatprep.mubr.f32.mxu0 0.0
        %1724 = vmatmul.mubr.f32.gmra.mrb[0].mxu0 %v1655
        %v1725 = vpop.f32.mrb[0].mxu0
        %v1726 = vadd.f32 0.0, %v1725
        %v1727 = vpop.f32.mrb[0].mxu0
        %1728 = vdwg.mxu0
        %v1729 = vmul.f32 %v1648, 0.35355338
        %v1730 = vmul.f32 %v1726, 0.35355338
        %v1731 = vadd.f32 %v1729, %v476
        %v1732 = vadd.f32 %v1730, %v477
        %v1733 = vsel %vm575, %v1731, -inf
        %1734 = vmax.xlane.f32.xlu0 %v1733
        %v1735 = vpop.xlane.xlu0 %1734
        %v1736 = vsel %vm575, %v1732, -inf
        %1737 = vmax.xlane.f32.xlu0 %v1736
        %v1738 = vpop.xlane.xlu0 %1737
        %v1739 = vsub.f32 %v1731, %v1735
        %v1740 = vsub.f32 %v1732, %v1738
        %v1741 = vmul.f32 %v1739, 1.442695
        %v1742 = vpow.pop %v1741
        %v1743 = vmul.f32 %v1740, 1.442695
        %v1744 = vpow.pop %v1743
        %v1745 = vsel %vm575, %v1742, 0.0
        %1746 = vadd.xlane.f32.xlu0 %v1745
        %v1747 = vpop.xlane.xlu0 %1746
        %v1748 = vsel %vm575, %v1744, 0.0
        %1749 = vadd.xlane.f32.xlu0 %v1748
        %v1750 = vpop.xlane.xlu0 %1749
        %v1751 = vrcp.pop %v1747
        %v1752 = vrcp.pop %v1750
        %v1753 = vmul.f32 %v1742, %v1751
        %v1754 = vmul.f32 %v1744, %v1752
        %1755 = vrot.lane.b32.xlu0 %v564, 40
        %v1756 = vpop.permute.xlu0 %1755
        %v1759 = vsel %vm575, %v1753, 0
        %1761 = vmatprep.subr.mxu0 0.0
        %1762 = vmatpush1.msra.mxu0 %v1756
        %1763 = vmatprep.subr.mxu0 0.0
        %1764 = vmatpush1.msra.mxu0 0.0
        %1765 = vmatprep.subr.mxu0 0.0
        %1766 = vmatpush1.msra.mxu0 0.0
        %1767 = vmatprep.subr.mxu0 0.0
        %1768 = vmatpush1.msra.mxu0 0.0
        %1769 = vmatprep.subr.mxu0 0.0
        %1770 = vmatpush1.msra.mxu0 0.0
        %1771 = vmatprep.subr.mxu0 0.0
        %1772 = vmatpush1.msra.mxu0 0.0
        %1773 = vmatprep.subr.mxu0 0.0
        %1774 = vmatpush1.msra.mxu0 0.0
        %1775 = vmatprep.subr.mxu0 0.0
        %1776 = vmatpush1.msra.mxu0 0.0
        %1777 = vmatprep.subr.mxu0 0.0
        %1778 = vmatpush1.msra.mxu0 0.0
        %1779 = vmatprep.subr.mxu0 0.0
        %1780 = vmatpush1.msra.mxu0 0.0
        %1781 = vmatprep.subr.mxu0 0.0
        %1782 = vmatpush1.msra.mxu0 0.0
        %1783 = vmatprep.subr.mxu0 0.0
        %1784 = vmatpush1.msra.mxu0 0.0
        %1785 = vmatprep.subr.mxu0 0.0
        %1786 = vmatpush1.msra.mxu0 0.0
        %1787 = vmatprep.subr.mxu0 0.0
        %1788 = vmatpush1.msra.mxu0 0.0
        %1789 = vmatprep.subr.mxu0 0.0
        %1790 = vmatpush1.msra.mxu0 0.0
        %1791 = vmatprep.subr.mxu0 0.0
        %1792 = vmatpush1.msra.mxu0 0.0
        %1793 = vmatprep.subr.mxu0 0.0
        %1794 = vmatpush1.msra.mxu0 0.0
        %1795 = vmatprep.subr.mxu0 0.0
        %1796 = vmatpush1.msra.mxu0 0.0
        %1797 = vmatprep.subr.mxu0 0.0
        %1798 = vmatpush1.msra.mxu0 0.0
        %1799 = vmatprep.subr.mxu0 0.0
        %1800 = vmatpush1.msra.mxu0 0.0
        %1801 = vmatprep.subr.mxu0 0.0
        %1802 = vmatpush1.msra.mxu0 0.0
        %1803 = vmatprep.subr.mxu0 0.0
        %1804 = vmatpush1.msra.mxu0 0.0
        %1805 = vmatprep.subr.mxu0 0.0
        %1806 = vmatpush1.msra.mxu0 0.0
        %1807 = vmatprep.subr.mxu0 0.0
        %1808 = vmatpush1.msra.mxu0 0.0
        %1809 = vmatprep.subr.mxu0 0.0
        %1810 = vmatpush1.msra.mxu0 0.0
        %1811 = vmatprep.subr.mxu0 0.0
        %1812 = vmatpush1.msra.mxu0 0.0
        %1813 = vmatprep.subr.mxu0 0.0
        %1814 = vmatpush1.msra.mxu0 0.0
        %1815 = vmatprep.subr.mxu0 0.0
        %1816 = vmatpush1.msra.mxu0 0.0
        %1817 = vmatprep.subr.mxu0 0.0
        %1818 = vmatpush1.msra.mxu0 0.0
        %1819 = vmatprep.subr.mxu0 0.0
        %1820 = vmatpush1.msra.mxu0 0.0
        %1821 = vmatprep.subr.mxu0 0.0
        %1822 = vmatpush1.msra.mxu0 0.0
        %1823 = vmatprep.subr.mxu0 0.0
        %1824 = vmatpush1.msra.mxu0 0.0
        %1825 = vmatprep.mubr.f32.mxu0 0.0
        %1826 = vmatmul.mubr.f32.gmra.mrb[0].mxu0 %v1759
        %v1827 = vpop.f32.mrb[0].mxu0
        %v1828 = vadd.f32 0.0, %v1827
        %v1829 = vpop.f32.mrb[0].mxu0
        %1830 = vdwg.mxu0
        %1831 = vrot.lane.b32.xlu0 %v569, 40
        %v1832 = vpop.permute.xlu0 %1831
        %v1835 = vsel %vm575, %v1754, 0
        %1837 = vmatprep.subr.mxu0 0.0
        %1838 = vmatpush1.msra.mxu0 %v1832
        %1839 = vmatprep.subr.mxu0 0.0
        %1840 = vmatpush1.msra.mxu0 0.0
        %1841 = vmatprep.subr.mxu0 0.0
        %1842 = vmatpush1.msra.mxu0 0.0
        %1843 = vmatprep.subr.mxu0 0.0
        %1844 = vmatpush1.msra.mxu0 0.0
        %1845 = vmatprep.subr.mxu0 0.0
        %1846 = vmatpush1.msra.mxu0 0.0
        %1847 = vmatprep.subr.mxu0 0.0
        %1848 = vmatpush1.msra.mxu0 0.0
        %1849 = vmatprep.subr.mxu0 0.0
        %1850 = vmatpush1.msra.mxu0 0.0
        %1851 = vmatprep.subr.mxu0 0.0
        %1852 = vmatpush1.msra.mxu0 0.0
        %1853 = vmatprep.subr.mxu0 0.0
        %1854 = vmatpush1.msra.mxu0 0.0
        %1855 = vmatprep.subr.mxu0 0.0
        %1856 = vmatpush1.msra.mxu0 0.0
        %1857 = vmatprep.subr.mxu0 0.0
        %1858 = vmatpush1.msra.mxu0 0.0
        %1859 = vmatprep.subr.mxu0 0.0
        %1860 = vmatpush1.msra.mxu0 0.0
        %1861 = vmatprep.subr.mxu0 0.0
        %1862 = vmatpush1.msra.mxu0 0.0
        %1863 = vmatprep.subr.mxu0 0.0
        %1864 = vmatpush1.msra.mxu0 0.0
        %1865 = vmatprep.subr.mxu0 0.0
        %1866 = vmatpush1.msra.mxu0 0.0
        %1867 = vmatprep.subr.mxu0 0.0
        %1868 = vmatpush1.msra.mxu0 0.0
        %1869 = vmatprep.subr.mxu0 0.0
        %1870 = vmatpush1.msra.mxu0 0.0
        %1871 = vmatprep.subr.mxu0 0.0
        %1872 = vmatpush1.msra.mxu0 0.0
        %1873 = vmatprep.subr.mxu0 0.0
        %1874 = vmatpush1.msra.mxu0 0.0
        %1875 = vmatprep.subr.mxu0 0.0
        %1876 = vmatpush1.msra.mxu0 0.0
        %1877 = vmatprep.subr.mxu0 0.0
        %1878 = vmatpush1.msra.mxu0 0.0
        %1879 = vmatprep.subr.mxu0 0.0
        %1880 = vmatpush1.msra.mxu0 0.0
        %1881 = vmatprep.subr.mxu0 0.0
        %1882 = vmatpush1.msra.mxu0 0.0
        %1883 = vmatprep.subr.mxu0 0.0
        %1884 = vmatpush1.msra.mxu0 0.0
        %1885 = vmatprep.subr.mxu0 0.0
        %1886 = vmatpush1.msra.mxu0 0.0
        %1887 = vmatprep.subr.mxu0 0.0
        %1888 = vmatpush1.msra.mxu0 0.0
        %1889 = vmatprep.subr.mxu0 0.0
        %1890 = vmatpush1.msra.mxu0 0.0
        %1891 = vmatprep.subr.mxu0 0.0
        %1892 = vmatpush1.msra.mxu0 0.0
        %1893 = vmatprep.subr.mxu0 0.0
        %1894 = vmatpush1.msra.mxu0 0.0
        %1895 = vmatprep.subr.mxu0 0.0
        %1896 = vmatpush1.msra.mxu0 0.0
        %1897 = vmatprep.subr.mxu0 0.0
        %1898 = vmatpush1.msra.mxu0 0.0
        %1899 = vmatprep.subr.mxu0 0.0
        %1900 = vmatpush1.msra.mxu0 0.0
        %1901 = vmatprep.mubr.f32.mxu0 0.0
        %1902 = vmatmul.mubr.f32.gmra.mrb[0].mxu0 %v1835
        %v1903 = vpop.f32.mrb[0].mxu0
        %v1904 = vadd.f32 0.0, %v1903
        %v1905 = vpop.f32.mrb[0].mxu0
        %1906 = vdwg.mxu0
        %1909 = vrot.lane.b32.xlu0 %v1160, 8
        %v1910 = vpop.permute.xlu0 %1909
        %1911 = vrot.lane.b32.xlu0 %v1236, 8
        %v1912 = vpop.permute.xlu0 %1911
        %1917 = vrot.lane.b32.xlu0 %v1494, 16
        %v1918 = vpop.permute.xlu0 %1917
        %1919 = vrot.lane.b32.xlu0 %v1570, 16
        %v1920 = vpop.permute.xlu0 %1919
        %1925 = vrot.lane.b32.xlu0 %v1828, 24
        %v1926 = vpop.permute.xlu0 %1925
        %1927 = vrot.lane.b32.xlu0 %v1904, 24
        %v1928 = vpop.permute.xlu0 %1927
        %v1931 = vsel %vm575, %v826, %v1910
        %v1932 = vsel %vm575, %v902, %v1912
        %vm1933 = vcmask 130048
        %v1934 = vsel %vm1933, %v1931, %v1918
        %v1935 = vsel %vm1933, %v1932, %v1920
        %vm1936 = vcmask 195584
        %v1937 = vsel %vm1936, %v1934, %v1926
        %v1938 = vsel %vm1936, %v1935, %v1928
        %1941 = vrot.lane.b32.xlu0 %v1063, 8
        %v1942 = vpop.permute.xlu0 %1941
        %1943 = vrot.lane.b32.xlu0 %v1064, 8
        %v1944 = vpop.permute.xlu0 %1943
        %1949 = vrot.lane.b32.xlu0 %v1397, 16
        %v1950 = vpop.permute.xlu0 %1949
        %1951 = vrot.lane.b32.xlu0 %v1398, 16
        %v1952 = vpop.permute.xlu0 %1951
        %1957 = vrot.lane.b32.xlu0 %v1731, 24
        %v1958 = vpop.permute.xlu0 %1957
        %1959 = vrot.lane.b32.xlu0 %v1732, 24
        %v1960 = vpop.permute.xlu0 %1959
        %v1963 = vsel %vm575, %v729, %v1942
        %v1964 = vsel %vm575, %v730, %v1944
        %v1965 = vsel %vm1933, %v1963, %v1950
        %v1966 = vsel %vm1933, %v1964, %v1952
        %v1967 = vsel %vm1936, %v1965, %v1958
        %v1968 = vsel %vm1936, %v1966, %v1960
        %v1969 = vld [vmem:[%s447] sm:$0xff]
        %v1970 = vld [vmem:[%s447 + $0x8] sm:$0xff]
        %v1971 = vld [vmem:[%s447 + $0x10] sm:$0xff]
        %v1972 = vld [vmem:[%s447 + $0x18] sm:$0xff]
        %v1973 = vlaneseq
        %v1974 = vshrl.u32 %v1973, 7
        %v1975 = vsub.s32 0, %v1974
        %v1976 = vrot.slane %v478, %v1975
        %v1978 = vsel %vm490, %v1937, 0
        %v1981 = vsel %vm490, %v1938, 0
        %1983 = vmatprep.subr.mxu0 0.0
        %1984 = vmatpush1.msra.mxu0 %v1969
        %1985 = vmatprep.subr.mxu0 0.0
        %1986 = vmatpush1.msra.mxu0 %v1970
        %1987 = vmatprep.subr.mxu0 0.0
        %1988 = vmatpush1.msra.mxu0 %v1971
        %1989 = vmatprep.subr.mxu0 0.0
        %1990 = vmatpush1.msra.mxu0 %v1972
        %1991 = vmatprep.subr.mxu0 0.0
        %1992 = vmatpush1.msra.mxu0 0.0
        %1993 = vmatprep.subr.mxu0 0.0
        %1994 = vmatpush1.msra.mxu0 0.0
        %1995 = vmatprep.subr.mxu0 0.0
        %1996 = vmatpush1.msra.mxu0 0.0
        %1997 = vmatprep.subr.mxu0 0.0
        %1998 = vmatpush1.msra.mxu0 0.0
        %1999 = vmatprep.subr.mxu0 0.0
        %2000 = vmatpush1.msra.mxu0 0.0
        %2001 = vmatprep.subr.mxu0 0.0
        %2002 = vmatpush1.msra.mxu0 0.0
        %2003 = vmatprep.subr.mxu0 0.0
        %2004 = vmatpush1.msra.mxu0 0.0
        %2005 = vmatprep.subr.mxu0 0.0
        %2006 = vmatpush1.msra.mxu0 0.0
        %2007 = vmatprep.subr.mxu0 0.0
        %2008 = vmatpush1.msra.mxu0 0.0
        %2009 = vmatprep.subr.mxu0 0.0
        %2010 = vmatpush1.msra.mxu0 0.0
        %2011 = vmatprep.subr.mxu0 0.0
        %2012 = vmatpush1.msra.mxu0 0.0
        %2013 = vmatprep.subr.mxu0 0.0
        %2014 = vmatpush1.msra.mxu0 0.0
        %2015 = vmatprep.subr.mxu0 0.0
        %2016 = vmatpush1.msra.mxu0 0.0
        %2017 = vmatprep.subr.mxu0 0.0
        %2018 = vmatpush1.msra.mxu0 0.0
        %2019 = vmatprep.subr.mxu0 0.0
        %2020 = vmatpush1.msra.mxu0 0.0
        %2021 = vmatprep.subr.mxu0 0.0
        %2022 = vmatpush1.msra.mxu0 0.0
        %2023 = vmatprep.subr.mxu0 0.0
        %2024 = vmatpush1.msra.mxu0 0.0
        %2025 = vmatprep.subr.mxu0 0.0
        %2026 = vmatpush1.msra.mxu0 0.0
        %2027 = vmatprep.subr.mxu0 0.0
        %2028 = vmatpush1.msra.mxu0 0.0
        %2029 = vmatprep.subr.mxu0 0.0
        %2030 = vmatpush1.msra.mxu0 0.0
        %2031 = vmatprep.subr.mxu0 0.0
        %2032 = vmatpush1.msra.mxu0 0.0
        %2033 = vmatprep.subr.mxu0 0.0
        %2034 = vmatpush1.msra.mxu0 0.0
        %2035 = vmatprep.subr.mxu0 0.0
        %2036 = vmatpush1.msra.mxu0 0.0
        %2037 = vmatprep.subr.mxu0 0.0
        %2038 = vmatpush1.msra.mxu0 0.0
        %2039 = vmatprep.subr.mxu0 0.0
        %2040 = vmatpush1.msra.mxu0 0.0
        %2041 = vmatprep.subr.mxu0 0.0
        %2042 = vmatpush1.msra.mxu0 0.0
        %2043 = vmatprep.subr.mxu0 0.0
        %2044 = vmatpush1.msra.mxu0 0.0
        %2045 = vmatprep.subr.mxu0 0.0
        %2046 = vmatpush1.msra.mxu0 0.0
        %2047 = vmatprep.mubr.f32.mxu0 0.0
        %2048 = vmatmul.mubr.f32.gmra.mrb[0].mxu0 %v1978
        %v2049 = vpop.f32.mrb[0].mxu0
        %v2050 = vadd.f32 %v1976, %v2049
        %v2051 = vpop.f32.mrb[0].mxu0
        %2052 = vmatprep.mubr.f32.mxu0 0.0
        %2053 = vmatmul.mubr.f32.gmra.mrb[0].mxu0 %v1981
        %v2054 = vpop.f32.mrb[0].mxu0
        %v2055 = vadd.f32 %v1976, %v2054
        %v2056 = vpop.f32.mrb[0].mxu0
        %2057 = vdwg.mxu0
        %v2058 = vadd.f32 %v2050, %v474
        %v2059 = vadd.f32 %v2055, %v475
        %v2060 = vsel %vm490, %v2058, 0.0
        %2061 = vadd.xlane.f32.xlu0 %v2060
        %v2062 = vpop.xlane.xlu0 %2061
        %v2063 = vsel %vm490, %v2059, 0.0
        %2064 = vadd.xlane.f32.xlu0 %v2063
        %v2065 = vpop.xlane.xlu0 %2064
        %v2066 = vrcp.pop 32.0
        %v2067 = vmul.f32 %v2062, %v2066
        %v2068 = vmul.f32 %v2065, %v2066
        %v2069 = vsub.f32 %v2058, %v2067
        %v2070 = vsub.f32 %v2059, %v2068
        %v2071 = vmul.f32 %v2069, %v2069
        %v2072 = vmul.f32 %v2070, %v2070
        %v2073 = vsel %vm490, %v2071, 0.0
        %2074 = vadd.xlane.f32.xlu0 %v2073
        %v2075 = vpop.xlane.xlu0 %2074
        %v2076 = vsel %vm490, %v2072, 0.0
        %2077 = vadd.xlane.f32.xlu0 %v2076
        %v2078 = vpop.xlane.xlu0 %2077
        %v2079 = vmul.f32 %v2075, %v2066
        %v2080 = vmul.f32 %v2078, %v2066
        %v2081 = vadd.f32 %v2079, 1e-12
        %v2082 = vadd.f32 %v2080, 1e-12
        %v2083 = vrsqrt.pop %v2081
        %v2084 = vrsqrt.pop %v2082
        %v2085 = vmul.f32 %v2069, %v2083
        %v2086 = vmul.f32 %v2070, %v2084
        %v2087 = vlaneseq
        %v2088 = vshrl.u32 %v2087, 7
        %v2089 = vsub.s32 2, %v2088
        %v2090 = vrot.slane %v478, %v2089
        %v2091 = vmul.f32 %v2085, %v2090
        %v2092 = vmul.f32 %v2086, %v2090
        %v2093 = vlaneseq
        %v2094 = vshrl.u32 %v2093, 7
        %v2095 = vsub.s32 3, %v2094
        %v2096 = vrot.slane %v478, %v2095
        %v2097 = vadd.f32 %v2091, %v2096
        %v2098 = vadd.f32 %v2092, %v2096
        %v2099 = vld [vmem:[%s452] sm:$0xff]
        %v2100 = vld [vmem:[%s452 + $0x8] sm:$0xff]
        %v2101 = vld [vmem:[%s452 + $0x10] sm:$0xff]
        %v2102 = vld [vmem:[%s452 + $0x18] sm:$0xff]
        %v2103 = vld [vmem:[%s455] sm:$0x1]
        %v2105 = vlaneseq
        %v2106 = vshrl.u32 %v2105, 7
        %v2107 = vsub.s32 0, %v2106
        %v2108 = vrot.slane %v2103, %v2107
        %v2111 = vsel %vm490, %v2097, 0
        %v2114 = vsel %vm490, %v2098, 0
        %2116 = vmatprep.subr.mxu0 0.0
        %2117 = vmatpush1.msra.mxu0 %v2099
        %2118 = vmatprep.subr.mxu0 0.0
        %2119 = vmatpush1.msra.mxu0 %v2100
        %2120 = vmatprep.subr.mxu0 0.0
        %2121 = vmatpush1.msra.mxu0 %v2101
        %2122 = vmatprep.subr.mxu0 0.0
        %2123 = vmatpush1.msra.mxu0 %v2102
        %2124 = vmatprep.subr.mxu0 0.0
        %2125 = vmatpush1.msra.mxu0 0.0
        %2126 = vmatprep.subr.mxu0 0.0
        %2127 = vmatpush1.msra.mxu0 0.0
        %2128 = vmatprep.subr.mxu0 0.0
        %2129 = vmatpush1.msra.mxu0 0.0
        %2130 = vmatprep.subr.mxu0 0.0
        %2131 = vmatpush1.msra.mxu0 0.0
        %2132 = vmatprep.subr.mxu0 0.0
        %2133 = vmatpush1.msra.mxu0 0.0
        %2134 = vmatprep.subr.mxu0 0.0
        %2135 = vmatpush1.msra.mxu0 0.0
        %2136 = vmatprep.subr.mxu0 0.0
        %2137 = vmatpush1.msra.mxu0 0.0
        %2138 = vmatprep.subr.mxu0 0.0
        %2139 = vmatpush1.msra.mxu0 0.0
        %2140 = vmatprep.subr.mxu0 0.0
        %2141 = vmatpush1.msra.mxu0 0.0
        %2142 = vmatprep.subr.mxu0 0.0
        %2143 = vmatpush1.msra.mxu0 0.0
        %2144 = vmatprep.subr.mxu0 0.0
        %2145 = vmatpush1.msra.mxu0 0.0
        %2146 = vmatprep.subr.mxu0 0.0
        %2147 = vmatpush1.msra.mxu0 0.0
        %2148 = vmatprep.subr.mxu0 0.0
        %2149 = vmatpush1.msra.mxu0 0.0
        %2150 = vmatprep.subr.mxu0 0.0
        %2151 = vmatpush1.msra.mxu0 0.0
        %2152 = vmatprep.subr.mxu0 0.0
        %2153 = vmatpush1.msra.mxu0 0.0
        %2154 = vmatprep.subr.mxu0 0.0
        %2155 = vmatpush1.msra.mxu0 0.0
        %2156 = vmatprep.subr.mxu0 0.0
        %2157 = vmatpush1.msra.mxu0 0.0
        %2158 = vmatprep.subr.mxu0 0.0
        %2159 = vmatpush1.msra.mxu0 0.0
        %2160 = vmatprep.subr.mxu0 0.0
        %2161 = vmatpush1.msra.mxu0 0.0
        %2162 = vmatprep.subr.mxu0 0.0
        %2163 = vmatpush1.msra.mxu0 0.0
        %2164 = vmatprep.subr.mxu0 0.0
        %2165 = vmatpush1.msra.mxu0 0.0
        %2166 = vmatprep.subr.mxu0 0.0
        %2167 = vmatpush1.msra.mxu0 0.0
        %2168 = vmatprep.subr.mxu0 0.0
        %2169 = vmatpush1.msra.mxu0 0.0
        %2170 = vmatprep.subr.mxu0 0.0
        %2171 = vmatpush1.msra.mxu0 0.0
        %2172 = vmatprep.subr.mxu0 0.0
        %2173 = vmatpush1.msra.mxu0 0.0
        %2174 = vmatprep.subr.mxu0 0.0
        %2175 = vmatpush1.msra.mxu0 0.0
        %2176 = vmatprep.subr.mxu0 0.0
        %2177 = vmatpush1.msra.mxu0 0.0
        %2178 = vmatprep.subr.mxu0 0.0
        %2179 = vmatpush1.msra.mxu0 0.0
        %2180 = vmatprep.mubr.f32.mxu0 0.0
        %2181 = vmatmul.mubr.f32.gmra.mrb[0].mxu0 %v2111
        %v2182 = vpop.f32.mrb[0].mxu0
        %v2183 = vadd.f32 %v2108, %v2182
        %v2184 = vpop.f32.mrb[0].mxu0
        %2185 = vmatprep.mubr.f32.mxu0 0.0
        %2186 = vmatmul.mubr.f32.gmra.mrb[0].mxu0 %v2114
        %v2187 = vpop.f32.mrb[0].mxu0
        %v2188 = vadd.f32 %v2108, %v2187
        %v2189 = vpop.f32.mrb[0].mxu0
        %2190 = vdwg.mxu0
        %v2191 = vmul.f32 %v2183, 0.5
        %v2192 = vmul.f32 %v2188, 0.5
        %v2193 = vmul.f32 %v2183, 0.70710677
        %v2194 = vmul.f32 %v2188, 0.70710677
        %v2195 = verf.f32.pop %v2193
        %v2196 = verf.f32.pop %v2194
        %v2197 = vadd.f32 %v2195, 1.0
        %v2198 = vadd.f32 %v2196, 1.0
        %v2199 = vmul.f32 %v2191, %v2197
        %v2200 = vmul.f32 %v2192, %v2198
        %v2201 = vld [vmem:[%s460] sm:$0xff]
        %v2202 = vld [vmem:[%s460 + $0x8] sm:$0xff]
        %v2203 = vld [vmem:[%s460 + $0x10] sm:$0xff]
        %v2204 = vld [vmem:[%s460 + $0x18] sm:$0xff]
        %v2205 = vld [vmem:[%s460 + $0x20] sm:$0xff]
        %v2206 = vld [vmem:[%s460 + $0x28] sm:$0xff]
        %v2207 = vld [vmem:[%s460 + $0x30] sm:$0xff]
        %v2208 = vld [vmem:[%s460 + $0x38] sm:$0xff]
        %v2209 = vlaneseq
        %v2210 = vshrl.u32 %v2209, 7
        %v2211 = vsub.s32 1, %v2210
        %v2212 = vrot.slane %v478, %v2211
        %vm2213 = vcmask 523264
        %v2215 = vsel %vm2213, %v2199, 0
        %v2218 = vsel %vm2213, %v2200, 0
        %2220 = vmatprep.subr.mxu0 0.0
        %2221 = vmatpush1.msra.mxu0 %v2201
        %2222 = vmatprep.subr.mxu0 0.0
        %2223 = vmatpush1.msra.mxu0 %v2202
        %2224 = vmatprep.subr.mxu0 0.0
        %2225 = vmatpush1.msra.mxu0 %v2203
        %2226 = vmatprep.subr.mxu0 0.0
        %2227 = vmatpush1.msra.mxu0 %v2204
        %2228 = vmatprep.subr.mxu0 0.0
        %2229 = vmatpush1.msra.mxu0 %v2205
        %2230 = vmatprep.subr.mxu0 0.0
        %2231 = vmatpush1.msra.mxu0 %v2206
        %2232 = vmatprep.subr.mxu0 0.0
        %2233 = vmatpush1.msra.mxu0 %v2207
        %2234 = vmatprep.subr.mxu0 0.0
        %2235 = vmatpush1.msra.mxu0 %v2208
        %2236 = vmatprep.subr.mxu0 0.0
        %2237 = vmatpush1.msra.mxu0 0.0
        %2238 = vmatprep.subr.mxu0 0.0
        %2239 = vmatpush1.msra.mxu0 0.0
        %2240 = vmatprep.subr.mxu0 0.0
        %2241 = vmatpush1.msra.mxu0 0.0
        %2242 = vmatprep.subr.mxu0 0.0
        %2243 = vmatpush1.msra.mxu0 0.0
        %2244 = vmatprep.subr.mxu0 0.0
        %2245 = vmatpush1.msra.mxu0 0.0
        %2246 = vmatprep.subr.mxu0 0.0
        %2247 = vmatpush1.msra.mxu0 0.0
        %2248 = vmatprep.subr.mxu0 0.0
        %2249 = vmatpush1.msra.mxu0 0.0
        %2250 = vmatprep.subr.mxu0 0.0
        %2251 = vmatpush1.msra.mxu0 0.0
        %2252 = vmatprep.subr.mxu0 0.0
        %2253 = vmatpush1.msra.mxu0 0.0
        %2254 = vmatprep.subr.mxu0 0.0
        %2255 = vmatpush1.msra.mxu0 0.0
        %2256 = vmatprep.subr.mxu0 0.0
        %2257 = vmatpush1.msra.mxu0 0.0
        %2258 = vmatprep.subr.mxu0 0.0
        %2259 = vmatpush1.msra.mxu0 0.0
        %2260 = vmatprep.subr.mxu0 0.0
        %2261 = vmatpush1.msra.mxu0 0.0
        %2262 = vmatprep.subr.mxu0 0.0
        %2263 = vmatpush1.msra.mxu0 0.0
        %2264 = vmatprep.subr.mxu0 0.0
        %2265 = vmatpush1.msra.mxu0 0.0
        %2266 = vmatprep.subr.mxu0 0.0
        %2267 = vmatpush1.msra.mxu0 0.0
        %2268 = vmatprep.subr.mxu0 0.0
        %2269 = vmatpush1.msra.mxu0 0.0
        %2270 = vmatprep.subr.mxu0 0.0
        %2271 = vmatpush1.msra.mxu0 0.0
        %2272 = vmatprep.subr.mxu0 0.0
        %2273 = vmatpush1.msra.mxu0 0.0
        %2274 = vmatprep.subr.mxu0 0.0
        %2275 = vmatpush1.msra.mxu0 0.0
        %2276 = vmatprep.subr.mxu0 0.0
        %2277 = vmatpush1.msra.mxu0 0.0
        %2278 = vmatprep.subr.mxu0 0.0
        %2279 = vmatpush1.msra.mxu0 0.0
        %2280 = vmatprep.subr.mxu0 0.0
        %2281 = vmatpush1.msra.mxu0 0.0
        %2282 = vmatprep.subr.mxu0 0.0
        %2283 = vmatpush1.msra.mxu0 0.0
        %2284 = vmatprep.mubr.f32.mxu0 0.0
        %2285 = vmatmul.mubr.f32.gmra.mrb[0].mxu0 %v2215
        %v2286 = vpop.f32.mrb[0].mxu0
        %v2287 = vadd.f32 %v2212, %v2286
        %v2288 = vpop.f32.mrb[0].mxu0
        %2289 = vmatprep.mubr.f32.mxu0 0.0
        %2290 = vmatmul.mubr.f32.gmra.mrb[0].mxu0 %v2218
        %v2291 = vpop.f32.mrb[0].mxu0
        %v2292 = vadd.f32 %v2212, %v2291
        %v2293 = vpop.f32.mrb[0].mxu0
        %2294 = vdwg.mxu0
        %v2295 = vadd.f32 %v2287, %v2097
        %v2296 = vadd.f32 %v2292, %v2098
        %v2297 = vsel %vm490, %v2295, 0.0
        %2298 = vadd.xlane.f32.xlu0 %v2297
        %v2299 = vpop.xlane.xlu0 %2298
        %v2300 = vsel %vm490, %v2296, 0.0
        %2301 = vadd.xlane.f32.xlu0 %v2300
        %v2302 = vpop.xlane.xlu0 %2301
        %v2303 = vmul.f32 %v2299, %v2066
        %v2304 = vmul.f32 %v2302, %v2066
        %v2305 = vsub.f32 %v2295, %v2303
        %v2306 = vsub.f32 %v2296, %v2304
        %v2307 = vmul.f32 %v2305, %v2305
        %v2308 = vmul.f32 %v2306, %v2306
        %v2309 = vsel %vm490, %v2307, 0.0
        %2310 = vadd.xlane.f32.xlu0 %v2309
        %v2311 = vpop.xlane.xlu0 %2310
        %v2312 = vsel %vm490, %v2308, 0.0
        %2313 = vadd.xlane.f32.xlu0 %v2312
        %v2314 = vpop.xlane.xlu0 %2313
        %v2315 = vmul.f32 %v2311, %v2066
        %v2316 = vmul.f32 %v2314, %v2066
        %v2317 = vadd.f32 %v2315, 1e-12
        %v2318 = vadd.f32 %v2316, 1e-12
        %v2319 = vrsqrt.pop %v2317
        %v2320 = vrsqrt.pop %v2318
        %v2321 = vmul.f32 %v2305, %v2319
        %v2322 = vmul.f32 %v2306, %v2320
        %v2323 = vlaneseq
        %v2324 = vshrl.u32 %v2323, 7
        %v2325 = vsub.s32 4, %v2324
        %v2326 = vrot.slane %v478, %v2325
        %v2327 = vmul.f32 %v2321, %v2326
        %v2328 = vmul.f32 %v2322, %v2326
        %v2329 = vlaneseq
        %v2330 = vshrl.u32 %v2329, 7
        %v2331 = vsub.s32 5, %v2330
        %v2332 = vrot.slane %v478, %v2331
        %v2333 = vadd.f32 %v2327, %v2332
        %v2334 = vadd.f32 %v2328, %v2332
        %2335 = vst.msk [vmem:[#allocation2] sm:$0xff] %vm490, %v2333
        %2336 = vst.msk [vmem:[#allocation2 + $0x8] sm:$0xff] %vm490, %v2334
        %2337 = vst.msk [vmem:[#allocation6] sm:$0xff] %vm490, %v2333
        %2338 = vst.msk [vmem:[#allocation6 + $0x8] sm:$0xff] %vm490, %v2334
        %2339 = vst.msk [vmem:[#allocation7] sm:$0xff] %vm490, %v1967
        %2340 = vst.msk [vmem:[#allocation7 + $0x8] sm:$0xff] %vm490, %v1968
        // Predicated region
        $region65: #{tpu_custom_call.1} parent=55 // pred_check
          %p2341 = pneg %p262
        $region66: #{tpu_custom_call.1} parent=55 // pred_check_branch
          %2343 = sbr.rel (%p2341) target = $region68
        $region67: #{tpu_custom_call.1} parent=55 // pred_region
          %s2345 = ssub.s32 256, 256
          %2346 = vsyncadd [#allocation5], %s2345
          %s2347 = sshll.u32 [#allocation6], 4
          %s2348 = int_to_ptr.vmem [resolvable:$true] %s2347
          %2353 = dma.vmem_to_hbm [thread:$0]  %s2348, 256, %s9, [#allocation5], 128, 128, 8
        $region68: #{tpu_custom_call.1} parent=55 // pred_fallthru
          _
        // Predicated region
        $region69: #{tpu_custom_call.1} parent=55 // pred_check
          %p2354 = pneg %p283
        $region70: #{tpu_custom_call.1} parent=55 // pred_check_branch
          %2356 = sbr.rel (%p2354) target = $region72
        $region71: #{tpu_custom_call.1} parent=55 // pred_region
          %s2358 = ssub.s32 256, 256
          %2359 = vsyncadd [#allocation8], %s2358
          %s2360 = sshll.u32 [#allocation7], 4
          %s2361 = int_to_ptr.vmem [resolvable:$true] %s2360
          %2366 = dma.vmem_to_hbm [thread:$0]  %s2361, 256, %s10, [#allocation8], 128, 128, 8
        $region72: #{tpu_custom_call.1} parent=55 // pred_fallthru
          _
        // Predicated region
        $region73: #{tpu_custom_call.1} parent=55 // pred_check
          %p2367 = pneg %p262
        $region74: #{tpu_custom_call.1} parent=55 // pred_check_branch
          %2369 = sbr.rel (%p2367) target = $region76
        $region75: #{tpu_custom_call.1} parent=55 // pred_region
          %2370 = dma.done [#allocation5], 256
        $region76: #{tpu_custom_call.1} parent=55 // pred_fallthru
          _
        // Predicated region
        $region77: #{tpu_custom_call.1} parent=55 // pred_check
          %p2371 = pneg %p283
        $region78: #{tpu_custom_call.1} parent=55 // pred_check_branch
          %2373 = sbr.rel (%p2371) target = $region80
        $region79: #{tpu_custom_call.1} parent=55 // pred_region
          %2374 = dma.done [#allocation8], 256
        $region80: #{tpu_custom_call.1} parent=55 // pred_fallthru
          _
      $region56: #{tpu_custom_call.1} parent=5 // pred_fallthru
        _
      %p2375 = scmp.le.s32.totalorder 2, %s20
      // Predicated region
      $region81: #{tpu_custom_call.1} parent=5 // pred_check
        %p2376 = pneg %p2375
      $region82: #{tpu_custom_call.1} parent=5 // pred_check_branch
        %2378 = sbr.rel (%p2376) target = $region84
      $region83: #{tpu_custom_call.1} parent=5 // pred_region
        %s2379 = ssub.s32 %s20, 2
      $region84: #{tpu_custom_call.1} parent=5 // pred_fallthru
        _
    $region6: #{tpu_custom_call.1} parent=1 // loop_footer
      %s24 = sadd.s32 1, %s20
    $region7: #{tpu_custom_call.1} parent=1 // loop_footer_branch
      %19 = sbr.rel target = $region3
    $region8: #{tpu_custom_call.1} parent=1 // loop_exit
      _
    %2380 = vsyncpa [#allocation4], 1
    %s2381 = scalar_lea.sflag [#allocation4], 1
    %2382 = vsyncpa %s2381, 1
    %2383 = vsyncpa [#allocation5], 1
    %s2384 = scalar_lea.sflag [#allocation5], 1
    %2385 = vsyncpa %s2384, 1
    %2386 = vsyncpa [#allocation8], 1

</llo_original>
